<compile_context>
chip_gen: v7x
topology: tpu7x:2x2x1
jax: 0.10.0
libtpu: 0.0.40
codegen_flags: <defaults>
</compile_context>

<pallas_src>
import functools
import math

import numpy as np
import jax
import jax.numpy as jnp
from jax.experimental import pallas as pl
from jax.experimental.pallas import tpu as pltpu


def _round_up(x, m):
    return (x + m - 1) // m * m


# ----------------------------------------------------------------------------
# Fused tiled matmul kernel (MXU hot path): out = act(A @ B + bias [+ res])
# ----------------------------------------------------------------------------
def _mm_fused_kernel(*refs, relu, has_residual):
    if has_residual:
        a_ref, b_ref, bias_ref, r_ref, o_ref, acc_ref = refs
    else:
        a_ref, b_ref, bias_ref, o_ref, acc_ref = refs

    @pl.when(pl.program_id(2) == 0)
    def _init():
        acc_ref[...] = jnp.zeros_like(acc_ref)

    acc_ref[...] += jnp.dot(a_ref[...], b_ref[...],
                            preferred_element_type=jnp.float32)

    @pl.when(pl.program_id(2) == pl.num_programs(2) - 1)
    def _done():
        y = acc_ref[...] + bias_ref[...]
        if has_residual:
            y = y + r_ref[...]
        if relu:
            y = jnp.maximum(y, 0.0)
        o_ref[...] = y.astype(o_ref.dtype)


def _choose_tn(N):
    if N % 128 == 0:
        for t in (512, 256, 128):
            if N % t == 0:
                return t
    return N                              # full-dim block (N = 10, 64, ...)


def _choose_tm(M):
    if M <= 512:
        return M, M                       # full-dim block, no pad (legal even if not %8)
    for t in range(512, 7, -8):           # largest multiple of 8 dividing M
        if M % t == 0:
            return t, M
    return 256, _round_up(M, 256)         # fallback: pad rows (not hit in this model)


def _choose_tk(K, tn):
    if K <= 2304:
        return K, K                       # whole reduction in one step, no pad
    # keep the (tk, tn) f32 B tile around ~2 MiB
    cap = max(128, ((2 * 1024 * 1024) // 4) // max(tn, 1))
    cap = min(cap, K)
    cap = (cap // 128) * 128
    for t in range(cap, 0, -128):         # largest multiple of 128 dividing K
        if K % t == 0:
            return t, K
    t = min(cap, 2048)
    return t, _round_up(K, t)             # fallback: pad K (not hit in this model)


def fused_matmul(a, b, bias=None, residual=None, relu=False):
    """act((M,K) @ (K,N) + bias [+ residual]) in f32, tiled for the MXU."""
    M, K = a.shape
    K2, N = b.shape
    assert K == K2
    if bias is None:
        bias = jnp.zeros((N,), jnp.float32)
    bias2d = bias.reshape(1, N).astype(jnp.float32)

    tn = _choose_tn(N)
    tm, Mp = _choose_tm(M)
    tk, Kp = _choose_tk(K, tn)

    a_p = a
    if Mp != M or Kp != K:
        a_p = jnp.pad(a, ((0, Mp - M), (0, Kp - K)))
    b_p = b if Kp == K else jnp.pad(b, ((0, Kp - K), (0, 0)))

    has_res = residual is not None
    inputs = [a_p, b_p, bias2d]
    in_specs = [
        pl.BlockSpec((tm, tk), lambda i, j, k: (i, k)),
        pl.BlockSpec((tk, tn), lambda i, j, k: (k, j)),
        pl.BlockSpec((1, tn), lambda i, j, k: (0, j)),
    ]
    if has_res:
        r_p = residual if Mp == M else jnp.pad(residual, ((0, Mp - M), (0, 0)))
        inputs.append(r_p)
        in_specs.append(pl.BlockSpec((tm, tn), lambda i, j, k: (i, j)))

    grid = (Mp // tm, N // tn, Kp // tk)
    out = pl.pallas_call(
        functools.partial(_mm_fused_kernel, relu=relu, has_residual=has_res),
        out_shape=jax.ShapeDtypeStruct((Mp, N), jnp.float32),
        grid_spec=pltpu.PrefetchScalarGridSpec(
            num_scalar_prefetch=0,
            grid=grid,
            in_specs=in_specs,
            out_specs=pl.BlockSpec((tm, tn), lambda i, j, k: (i, j)),
            scratch_shapes=[pltpu.VMEM((tm, tn), jnp.float32)]),
        compiler_params=pltpu.CompilerParams(
            dimension_semantics=("parallel", "parallel", "arbitrary")),
    )(*inputs)
    return out if Mp == M else out[:M]


# ----------------------------------------------------------------------------
# Max-pool: shifted slices (glue) + Pallas max reduction
# ----------------------------------------------------------------------------
def _max_reduce_kernel(x_ref, o_ref):
    o_ref[...] = jnp.max(x_ref[...], axis=0)


def maxpool_nhwc(x, k=3, s=2, p=1):
    N, H, W, C = x.shape
    OH = (H + 2 * p - k) // s + 1
    OW = (W + 2 * p - k) // s + 1
    xp = jnp.pad(x, ((0, 0), (p, p), (p, p), (0, 0)),
                 constant_values=-jnp.inf)
    slices = []
    for i in range(k):
        for j in range(k):
            slices.append(xp[:, i:i + s * (OH - 1) + 1:s,
                             j:j + s * (OW - 1) + 1:s, :])
    stacked = jnp.stack(slices, axis=0).reshape(k * k, N * OH * OW, C)
    out = pl.pallas_call(
        _max_reduce_kernel,
        out_shape=jax.ShapeDtypeStruct((N * OH * OW, C), jnp.float32),
    )(stacked)
    return out.reshape(N, OH, OW, C)


# ----------------------------------------------------------------------------
# Conv2d (no bias) + folded BN (+ residual) (+ ReLU) via im2col + fused matmul
# ----------------------------------------------------------------------------
def conv2d_fused(x, wmat, bias, kh, kw, stride, padding, relu, residual=None):
    N, H, W, C = x.shape
    sh, sw = stride if isinstance(stride, (tuple, list)) else (stride, stride)
    ph, pw = padding if isinstance(padding, (tuple, list)) else (padding, padding)
    OH = (H + 2 * ph - kh) // sh + 1
    OW = (W + 2 * pw - kw) // sw + 1
    if kh == 1 and kw == 1 and ph == 0 and pw == 0:
        pmat = x[:, ::sh, ::sw, :].reshape(N * OH * OW, C)
    else:
        xp = jnp.pad(x, ((0, 0), (ph, ph), (pw, pw), (0, 0)))
        patches = []
        for i in range(kh):
            for j in range(kw):
                patches.append(xp[:, i:i + sh * (OH - 1) + 1:sh,
                                  j:j + sw * (OW - 1) + 1:sw, :])
        # (kh*kw, N, OH, OW, C) -> (N*OH*OW, kh*kw*C); matches wmat row order
        pmat = jnp.stack(patches, axis=0).transpose(1, 2, 3, 0, 4)
        pmat = pmat.reshape(N * OH * OW, kh * kw * C)
    OC = wmat.shape[1]
    res2d = None if residual is None else residual.reshape(N * OH * OW, OC)
    out = fused_matmul(pmat, wmat, bias=bias, residual=res2d, relu=relu)
    return out.reshape(N, OH, OW, OC)


# ----------------------------------------------------------------------------
# Adaptive average pool to 28x28 (exact adaptive windows as a pooling matrix)
# ----------------------------------------------------------------------------
def _adaptive_pool_matrix(in_size, out_size):
    P = np.zeros((out_size, in_size), dtype=np.float32)
    for i in range(out_size):
        s = (i * in_size) // out_size
        e = -((-(i + 1) * in_size) // out_size)  # ceil
        P[i, s:e] = 1.0 / (e - s)
    return P


def adaptive_avg_pool_28(x):
    N, H, W, C = x.shape
    Ph = _adaptive_pool_matrix(H, 28)
    Pw = _adaptive_pool_matrix(W, 28)
    W2 = jnp.asarray(np.kron(Ph, Pw))                    # (784, H*W)
    xf = x.reshape(N, H * W, C).transpose(1, 0, 2).reshape(H * W, N * C)
    out = fused_matmul(W2, xf)                           # (784, N*C)
    return out.reshape(28, 28, N, C).transpose(2, 0, 1, 3)


# ----------------------------------------------------------------------------
# Parameter construction (deterministic, mirrors PyTorch __init__), BN folded
# ----------------------------------------------------------------------------
def kaiming_conv(key, oc, ic, kh, kw):
    # kaiming_normal_, mode='fan_out', nonlinearity='relu'
    fan_out = oc * kh * kw
    std = math.sqrt(2.0 / fan_out)
    return jax.random.normal(key, (oc, ic, kh, kw), jnp.float32) * std


def bn_params(c, eps=1e-5):
    # BatchNorm in eval mode with its freshly-initialized state:
    # gamma=1, beta=0, running_mean=0, running_var=1  ->  scale/shift form.
    gamma = jnp.ones((c,), jnp.float32)
    beta = jnp.zeros((c,), jnp.float32)
    mean = jnp.zeros((c,), jnp.float32)
    var = jnp.ones((c,), jnp.float32)
    scale = gamma / jnp.sqrt(var + eps)
    shift = beta - mean * scale
    return scale, shift


def fold_conv_bn(w_oihw, scale, shift):
    """Return (wmat, bias): matmul-ready (KH*KW*IC, OC) weight with BN folded."""
    OC, IC, KH, KW = w_oihw.shape
    w = w_oihw * scale.reshape(OC, 1, 1, 1)
    wmat = jnp.transpose(w, (2, 3, 1, 0)).reshape(KH * KW * IC, OC)
    return wmat, shift


def make_bottleneck_params(key, inplanes, planes, stride, with_downsample):
    ks = jax.random.split(key, 4)
    p = {'stride': stride}
    p['w1'], p['b1'] = fold_conv_bn(kaiming_conv(ks[0], planes, inplanes, 1, 1),
                                    *bn_params(planes))
    p['w2'], p['b2'] = fold_conv_bn(kaiming_conv(ks[1], planes, planes, 3, 3),
                                    *bn_params(planes))
    p['w3'], p['b3'] = fold_conv_bn(kaiming_conv(ks[2], planes * 4, planes, 1, 1),
                                    *bn_params(planes * 4))
    if with_downsample:
        p['wd'], p['bd'] = fold_conv_bn(
            kaiming_conv(ks[3], planes * 4, inplanes, 1, 1),
            *bn_params(planes * 4))
    return p


def init_res_a_params(key, layers=(1, 1, 1, 1), num_classes=10):
    nkeys = 3 + sum(layers)
    ks = list(jax.random.split(key, nkeys))
    params = {}
    params['w1'], params['b1'] = fold_conv_bn(kaiming_conv(ks[0], 64, 1, 7, 7),
                                              *bn_params(64))
    inplanes = 64
    cfg = [(64, layers[0], (1, 1)), (128, layers[1], 2),
           (256, layers[2], 3), (512, layers[3], 1)]
    kidx = 1
    all_layers = []
    for planes, nblocks, stride in cfg:
        blocks = []
        with_down = (stride != 1) or (inplanes != planes * 4)
        blocks.append(make_bottleneck_params(ks[kidx], inplanes, planes,
                                             stride, with_down))
        kidx += 1
        inplanes = planes * 4
        for _ in range(1, nblocks):
            blocks.append(make_bottleneck_params(ks[kidx], inplanes, planes,
                                                 1, False))
            kidx += 1
        all_layers.append(blocks)
    params['layers'] = all_layers
    in_features = 512 * 4 * 28 * 28  # 1605632
    k = 1.0 / math.sqrt(in_features)
    # fc weight stored pre-transposed as (in_features, num_classes): no runtime .T
    params['fc_w'] = jax.random.uniform(ks[kidx], (in_features, num_classes),
                                        jnp.float32, -k, k)
    params['fc_b'] = jax.random.uniform(ks[kidx + 1], (num_classes,),
                                        jnp.float32, -k, k)
    return params


# ----------------------------------------------------------------------------
# Forward pass
# ----------------------------------------------------------------------------
def bottleneck_forward(p, x):
    # torchvision-style Bottleneck (expansion=4), stride on the 3x3 conv.
    out = conv2d_fused(x, p['w1'], p['b1'], 1, 1, 1, 0, relu=True)
    out = conv2d_fused(out, p['w2'], p['b2'], 3, 3, p['stride'], 1, relu=True)
    if 'wd' in p:
        idn = conv2d_fused(x, p['wd'], p['bd'], 1, 1, p['stride'], 0, relu=False)
    else:
        idn = x
    # conv3 + bn3 + residual add + relu, all in the matmul epilogue
    out = conv2d_fused(out, p['w3'], p['b3'], 1, 1, 1, 0, relu=True,
                       residual=idn)
    return out


def res_a_forward(params, x_nchw):
    x = jnp.transpose(x_nchw, (0, 2, 3, 1)).astype(jnp.float32)  # NCHW -> NHWC
    x = conv2d_fused(x, params['w1'], params['b1'], 7, 7, 2, 3, relu=True)
    x = maxpool_nhwc(x, 3, 2, 1)
    for blocks in params['layers']:
        for bp in blocks:
            x = bottleneck_forward(bp, x)
    x = adaptive_avg_pool_28(x)                        # (B, 28, 28, 2048)
    B = x.shape[0]
    # match PyTorch x.view(B, -1) on NCHW: flatten in (C, H, W) order
    x = jnp.transpose(x, (0, 3, 1, 2)).reshape(B, -1)  # (B, 1605632)
    y = fused_matmul(x, params['fc_w'], bias=params['fc_b'], relu=False)
    return y


if __name__ == "__main__":
    key = jax.random.PRNGKey(0)
    pkey, xkey = jax.random.split(key)
    params = init_res_a_params(pkey, layers=(1, 1, 1, 1), num_classes=10)
    # in_channels=1 (conv1), small batch/spatial; 64x64 -> 3x3 before avgpool(28)
    x = jax.random.normal(xkey, (2, 1, 64, 64), jnp.float32)
    y = res_a_forward(params, x)
    y = jax.block_until_ready(y)
    assert y.shape == (2, 10) and y.dtype == jnp.float32
    print("KERNEL_OK")
</pallas_src>

<mosaic_0001>
module attributes {stable_mosaic.version = 11 : i64} {
  func.func @_mm_fused_kernel(%arg0: i32, %arg1: i32, %arg2: i32, %arg3: memref<512x49xf32, #tpu.memory_space<vmem>>, %arg4: memref<49x64xf32, #tpu.memory_space<vmem>>, %arg5: memref<1x64xf32, #tpu.memory_space<vmem>>, %arg6: memref<512x64xf32, #tpu.memory_space<vmem>>, %arg7: memref<512x64xf32, #tpu.memory_space<vmem>>) attributes {dimension_semantics = [#tpu.dimension_semantics<parallel>, #tpu.dimension_semantics<parallel>, #tpu.dimension_semantics<arbitrary>], iteration_bounds = array<i64: 4, 1, 1>, scalar_prefetch = 0 : i64, scratch_operands = 1 : i64, tpu.core_type = #tpu.core_type<tc>, window_params = [{transform_indices = @transform_0, window_bounds = array<i64: 512, 49>}, {transform_indices = @transform_1, window_bounds = array<i64: 49, 64>}, {transform_indices = @transform_2, window_bounds = array<i64: 1, 64>}, {transform_indices = @transform_3, window_bounds = array<i64: 512, 64>}]} {
    %c0_i32 = arith.constant 0 : i32
    %0 = arith.cmpi eq, %arg2, %c0_i32 : i32
    %1 = arith.extui %0 : i1 to i32
    %c0_i32_0 = arith.constant 0 : i32
    %2 = arith.cmpi ne, %1, %c0_i32_0 : i32
    scf.if %2 {
      %cst_10 = arith.constant 0.000000e+00 : f32
      %12 = vector.broadcast %cst_10 : f32 to vector<512x64xf32>
      %c0_11 = arith.constant 0 : index
      %c0_12 = arith.constant 0 : index
      %13 = vector.load %arg7[%c0_11, %c0_12] : memref<512x64xf32, #tpu.memory_space<vmem>>, vector<512x64xf32>
      tpu.vector_store %arg7[%c0_11, %c0_12], %12 {strides = array<i32>} : memref<512x64xf32, #tpu.memory_space<vmem>>, vector<512x64xf32>,
    } else {
    }
    %c0 = arith.constant 0 : index
    %c0_1 = arith.constant 0 : index
    %3 = vector.load %arg7[%c0, %c0_1] : memref<512x64xf32, #tpu.memory_space<vmem>>, vector<512x64xf32>
    %c0_2 = arith.constant 0 : index
    %c0_3 = arith.constant 0 : index
    %4 = vector.load %arg3[%c0_2, %c0_3] : memref<512x49xf32, #tpu.memory_space<vmem>>, vector<512x49xf32>
    %c0_4 = arith.constant 0 : index
    %c0_5 = arith.constant 0 : index
    %5 = vector.load %arg4[%c0_4, %c0_5] : memref<49x64xf32, #tpu.memory_space<vmem>>, vector<49x64xf32>
    %cst = arith.constant dense<0.000000e+00> : vector<512x64xf32>
    %6 = tpu.matmul %4, %5, %cst {dimension_numbers = #tpu.dot_dimension_numbers<[1], [0], [0], [1], [0, 0, 1, 1], [], []>} : vector<512x49xf32>, vector<49x64xf32>, vector<512x64xf32> -> vector<512x64xf32>
    %7 = arith.addf %3, %6 : vector<512x64xf32>
    %c0_6 = arith.constant 0 : index
    %c0_7 = arith.constant 0 : index
    %8 = vector.load %arg7[%c0_6, %c0_7] : memref<512x64xf32, #tpu.memory_space<vmem>>, vector<512x64xf32>
    tpu.vector_store %arg7[%c0_6, %c0_7], %7 {strides = array<i32>} : memref<512x64xf32, #tpu.memory_space<vmem>>, vector<512x64xf32>,
    %c0_i32_8 = arith.constant 0 : i32
    %9 = arith.cmpi eq, %arg2, %c0_i32_8 : i32
    %10 = arith.extui %9 : i1 to i32
    %c0_i32_9 = arith.constant 0 : i32
    %11 = arith.cmpi ne, %10, %c0_i32_9 : i32
    scf.if %11 {
      %c0_10 = arith.constant 0 : index
      %c0_11 = arith.constant 0 : index
      %12 = vector.load %arg7[%c0_10, %c0_11] : memref<512x64xf32, #tpu.memory_space<vmem>>, vector<512x64xf32>
      %c0_12 = arith.constant 0 : index
      %c0_13 = arith.constant 0 : index
      %13 = vector.load %arg5[%c0_12, %c0_13] : memref<1x64xf32, #tpu.memory_space<vmem>>, vector<1x64xf32>
      %14 = vector.broadcast %13 : vector<1x64xf32> to vector<512x64xf32>
      %15 = arith.addf %12, %14 : vector<512x64xf32>
      %cst_14 = arith.constant 0.000000e+00 : f32
      %16 = vector.broadcast %cst_14 : f32 to vector<512x64xf32>
      %17 = arith.maximumf %15, %16 : vector<512x64xf32>
      %c0_15 = arith.constant 0 : index
      %c0_16 = arith.constant 0 : index
      %18 = vector.load %arg6[%c0_15, %c0_16] : memref<512x64xf32, #tpu.memory_space<vmem>>, vector<512x64xf32>
      tpu.vector_store %arg6[%c0_15, %c0_16], %17 {strides = array<i32>} : memref<512x64xf32, #tpu.memory_space<vmem>>, vector<512x64xf32>,
    } else {
    }
    return
  }
  func.func @transform_0(%arg0: i32, %arg1: i32, %arg2: i32) -> (i32, i32) {
    %c0_i32 = arith.constant 0 : i32
    return %arg0, %arg2 : i32, i32
  }
  func.func @transform_1(%arg0: i32, %arg1: i32, %arg2: i32) -> (i32, i32) {
    %c0_i32 = arith.constant 0 : i32
    return %arg2, %arg1 : i32, i32
  }
  func.func @transform_2(%arg0: i32, %arg1: i32, %arg2: i32) -> (i32, i32) {
    %c0_i32 = arith.constant 0 : i32
    %c0_i32_0 = arith.constant 0 : i32
    return %c0_i32, %arg1 : i32, i32
  }
  func.func @transform_3(%arg0: i32, %arg1: i32, %arg2: i32) -> (i32, i32) {
    %c0_i32 = arith.constant 0 : i32
    return %arg0, %arg1 : i32, i32
  }
}

</mosaic_0001>

<llo_original>
// kernel: tpu_custom_call.1
$region0: #{tpu_custom_call.1}
  #allocation0 [shape = 'u32[]', space=smem, size = 0x4, offset = 0x4, fixed_abs, tag = 'smem constant byte address 0x4 - core index']
  #allocation1 [shape = 'u32[144,128]{1,0:T(1,128)}', space=vmem, size = 0x12000, scoped, tag = 'internal scratch']
  #allocation2 [shape = 'f32[512,64]{1,0:T(8,128)}', space=vmem, size = 0x40000, scoped, tag = 'scratch operand']
  %s0 = inlined_call_operand.vmem [shape: f32[2048,49], index: 0, kind: input, shape index: {}]
  %s1 = inlined_call_operand.vmem [shape: f32[49,64], index: 1, kind: input, shape index: {}]
  %s2 = inlined_call_operand.vmem [shape: f32[1,64], index: 2, kind: input, shape index: {}]
  %s3 = inlined_call_operand.vmem [shape: f32[2048,64], index: 3, kind: output, shape index: {}]
  %s4 = sld [smem:[#allocation0]]
  $region53: #{tpu_custom_call.1} parent=0
    _
  %s6 = ssub.s32 1, %s4
  %s7 = scalar_select 0, %s6, %s4
  loop: start=0, step=1, limit=6
  $region2: #{tpu_custom_call.1} parent=0 // loop_pre_header
    _
  $region3: #{tpu_custom_call.1} parent=0 // loop_header
    %s9 = sphi 0, %s13
    %p10 = scmp.ge.s32.totalorder %s9, 6
    %s16 = sphi 0, %s35
    %s17 = sphi 0, %s31
    %s18 = sphi 0, %s27
    %s19 = sphi 0, %s16
    %s20 = sphi 0, %s17
    %s21 = sphi 0, %s18
    %s22 = sphi 0, %s19
    %s23 = sphi 0, %s20
    %s24 = sphi 0, %s21
    %s40 = sphi 0, %s42
    %s43 = sphi 0, %s40
    %s44 = sphi 0, %s43
    %s60 = sphi 0, %s44
    %s68 = sphi 0, %s70
    %s71 = sphi 0, %s68
    %s72 = sphi 0, %s71
    %s88 = sphi 0, %s72
    %s94 = sphi 0, %s96
    %s97 = sphi 0, %s94
    %s98 = sphi 0, %s97
    %s114 = sphi 0, %s98
    %s122 = sphi 0, %s124
    %s125 = sphi 0, %s122
    %s126 = sphi 0, %s125
    %s142 = sphi 0, %s126
  $region4: #{tpu_custom_call.1} parent=0 // loop_header_branch
    %12 = sbr.rel (%p10) target = $region8
  $region5: #{tpu_custom_call.1} parent=0 // loop_body
    %s14 = ssub.s32 %s9, 1
    %s15 = ssub.s32 %s9, 2
    %s25 = sadd.s32 1, %s18
    %p26 = scmp.ge.s32.totalorder %s25, 1
    %s27 = scalar_select %p26, 0, %s25
    %s28 = sadd.s32 1, %s17
    %s29 = scalar_select %p26, %s28, %s17
    %p30 = scmp.ge.s32.totalorder %s29, 1
    %s31 = scalar_select %p30, 0, %s29
    %s32 = sadd.s32 1, %s16
    %s33 = scalar_select %p30, %s32, %s16
    %p34 = scmp.ge.s32.totalorder %s33, 4
    %s35 = scalar_select %p34, 0, %s33
    %s36 = ssub.s32 %s16, %s35
    %s37 = ssub.s32 %s18, %s27
    %s38 = sor.u32 %s36, %s37
    %p39 = scmp.eq.s32.totalorder %s38, 0
    %s41 = sadd.s32 %s40, 1
    %s42 = scalar_select %p39, %s40, %s41
    %p45 = pneg %p39
    %p46 = scmp.eq.s32.totalorder %s9, 3
    %p47 = por %p45, %p46
    %p48 = scmp.ne.s32.totalorder %s40, %s43
    %p49 = scmp.eq.s32.totalorder %s9, 0
    %p50 = por %p48, %p49
    %p51 = scmp.ne.s32.totalorder %s40, %s43
    %p52 = scmp.eq.s32.totalorder %s14, 3
    %p53 = por %p51, %p52
    %p54 = scmp.ne.s32.totalorder %s43, %s44
    %p55 = scmp.eq.s32.totalorder %s14, 0
    %p56 = por %p54, %p55
    %p57 = scmp.ne.s32.totalorder %s43, %s44
    %p58 = scmp.eq.s32.totalorder %s15, 3
    %p59 = por %p57, %p58
    %p61 = scmp.ne.s32.totalorder %s44, %s60
    %p62 = scmp.eq.s32.totalorder %s15, 0
    %p63 = por %p61, %p62
    %s64 = ssub.s32 %s18, %s27
    %s65 = ssub.s32 %s17, %s31
    %s66 = sor.u32 %s64, %s65
    %p67 = scmp.eq.s32.totalorder %s66, 0
    %s69 = sadd.s32 %s68, 1
    %s70 = scalar_select %p67, %s68, %s69
    %p73 = pneg %p67
    %p74 = scmp.eq.s32.totalorder %s9, 3
    %p75 = por %p73, %p74
    %p76 = scmp.ne.s32.totalorder %s68, %s71
    %p77 = scmp.eq.s32.totalorder %s9, 0
    %p78 = por %p76, %p77
    %p79 = scmp.ne.s32.totalorder %s68, %s71
    %p80 = scmp.eq.s32.totalorder %s14, 3
    %p81 = por %p79, %p80
    %p82 = scmp.ne.s32.totalorder %s71, %s72
    %p83 = scmp.eq.s32.totalorder %s14, 0
    %p84 = por %p82, %p83
    %p85 = scmp.ne.s32.totalorder %s71, %s72
    %p86 = scmp.eq.s32.totalorder %s15, 3
    %p87 = por %p85, %p86
    %p89 = scmp.ne.s32.totalorder %s72, %s88
    %p90 = scmp.eq.s32.totalorder %s15, 0
    %p91 = por %p89, %p90
    %s92 = ssub.s32 %s17, %s31
    %p93 = scmp.eq.s32.totalorder %s92, 0
    %s95 = sadd.s32 %s94, 1
    %s96 = scalar_select %p93, %s94, %s95
    %p99 = pneg %p93
    %p100 = scmp.eq.s32.totalorder %s9, 3
    %p101 = por %p99, %p100
    %p102 = scmp.ne.s32.totalorder %s94, %s97
    %p103 = scmp.eq.s32.totalorder %s9, 0
    %p104 = por %p102, %p103
    %p105 = scmp.ne.s32.totalorder %s94, %s97
    %p106 = scmp.eq.s32.totalorder %s14, 3
    %p107 = por %p105, %p106
    %p108 = scmp.ne.s32.totalorder %s97, %s98
    %p109 = scmp.eq.s32.totalorder %s14, 0
    %p110 = por %p108, %p109
    %p111 = scmp.ne.s32.totalorder %s97, %s98
    %p112 = scmp.eq.s32.totalorder %s15, 3
    %p113 = por %p111, %p112
    %p115 = scmp.ne.s32.totalorder %s98, %s114
    %p116 = scmp.eq.s32.totalorder %s15, 0
    %p117 = por %p115, %p116
    %s118 = ssub.s32 %s16, %s35
    %s119 = ssub.s32 %s17, %s31
    %s120 = sor.u32 %s118, %s119
    %p121 = scmp.eq.s32.totalorder %s120, 0
    %s123 = sadd.s32 %s122, 1
    %s124 = scalar_select %p121, %s122, %s123
    %p127 = pneg %p121
    %p128 = scmp.eq.s32.totalorder %s9, 3
    %p129 = por %p127, %p128
    %p130 = scmp.ne.s32.totalorder %s122, %s125
    %p131 = scmp.eq.s32.totalorder %s9, 0
    %p132 = por %p130, %p131
    %p133 = scmp.ne.s32.totalorder %s122, %s125
    %p134 = scmp.eq.s32.totalorder %s14, 3
    %p135 = por %p133, %p134
    %p136 = scmp.ne.s32.totalorder %s125, %s126
    %p137 = scmp.eq.s32.totalorder %s14, 0
    %p138 = por %p136, %p137
    %p139 = scmp.ne.s32.totalorder %s125, %s126
    %p140 = scmp.eq.s32.totalorder %s15, 3
    %p141 = por %p139, %p140
    %p143 = scmp.ne.s32.totalorder %s126, %s142
    %p144 = scmp.eq.s32.totalorder %s15, 0
    %p145 = por %p143, %p144
    %p146 = scmp.le.s32.totalorder 1, %s9
    %p147 = scmp.lt.s32.totalorder %s9, 5
    %p148 = pnand %p146, %p147
    %p149 = pneg %p148
    // Predicated region
    $region9: #{tpu_custom_call.1} parent=5 // pred_check
      _
    $region10: #{tpu_custom_call.1} parent=5 // pred_check_branch
      %151 = sbr.rel (%p148) target = $region12
    $region11: #{tpu_custom_call.1} parent=5 // pred_region
      %s152 = ssub.s32 %s9, 1
      // Predicated region
      $region13: #{tpu_custom_call.1} parent=11 // pred_check
        %p153 = pneg %p84
      $region14: #{tpu_custom_call.1} parent=11 // pred_check_branch
        %155 = sbr.rel (%p153) target = $region16
      $region15: #{tpu_custom_call.1} parent=11 // pred_region
        %s156 = smul.u32 7, %s21
        %p157 = scmp.lt.s32.totalorder %s156, 6
        %s158 = scalar_select %p157, %s156, 6
        %p159 = scmp.lt.s32.totalorder %s20, 0
        %s160 = scalar_select %p159, %s20, 0
        %s161 = sadd.s32 %s160, %s158
        %s162 = smul.addr %s161, 8
        %s163 = scalar_lea.vmem %s1, %s162
        %s164 = smul.u32 7, %s21
      $region16: #{tpu_custom_call.1} parent=11 // pred_fallthru
        _
      // Predicated region
      $region17: #{tpu_custom_call.1} parent=11 // pred_check
        %p165 = pneg %p110
      $region18: #{tpu_custom_call.1} parent=11 // pred_check_branch
        %167 = sbr.rel (%p165) target = $region20
      $region19: #{tpu_custom_call.1} parent=11 // pred_region
        %p168 = scmp.lt.s32.totalorder %s20, 0
        %s169 = scalar_select %p168, %s20, 0
        %s170 = scalar_lea.vmem %s2, %s169
      $region20: #{tpu_custom_call.1} parent=11 // pred_fallthru
        _
    $region12: #{tpu_custom_call.1} parent=5 // pred_fallthru
      _
    %p171 = scmp.lt.s32.totalorder %s9, 4
    // Predicated region
    $region21: #{tpu_custom_call.1} parent=5 // pred_check
      %p172 = pneg %p171
    $region22: #{tpu_custom_call.1} parent=5 // pred_check_branch
      %174 = sbr.rel (%p172) target = $region24
    $region23: #{tpu_custom_call.1} parent=5 // pred_region
      // Predicated region
      $region25: #{tpu_custom_call.1} parent=23 // pred_check
        %p175 = pneg %p50
      $region26: #{tpu_custom_call.1} parent=23 // pred_check_branch
        %177 = sbr.rel (%p175) target = $region28
      $region27: #{tpu_custom_call.1} parent=23 // pred_region
        %s178 = smul.u32 64, %s16
        %p179 = scmp.lt.s32.totalorder %s178, 255
        %s180 = scalar_select %p179, %s178, 255
        %p181 = scmp.lt.s32.totalorder %s18, 0
        %s182 = scalar_select %p181, %s18, 0
        %s183 = sadd.s32 %s182, %s180
        %s184 = smul.addr %s183, 8
        %s185 = scalar_lea.vmem %s0, %s184
        %s186 = smul.u32 64, %s16
      $region28: #{tpu_custom_call.1} parent=23 // pred_fallthru
        _
    $region24: #{tpu_custom_call.1} parent=5 // pred_fallthru
      _
    %p187 = scmp.le.s32.totalorder 1, %s9
    %p188 = scmp.lt.s32.totalorder %s9, 5
    %p189 = pnand %p187, %p188
    %p190 = pneg %p189
    // Predicated region
    $region29: #{tpu_custom_call.1} parent=5 // pred_check
      _
    $region30: #{tpu_custom_call.1} parent=5 // pred_check_branch
      %192 = sbr.rel (%p189) target = $region32
    $region31: #{tpu_custom_call.1} parent=5 // pred_region
      %s193 = ssub.s32 %s9, 1
      %s194 = smul.u32 64, %s19
      %p195 = scmp.lt.s32.totalorder %s194, 255
      %s196 = scalar_select %p195, %s194, 255
      %p197 = scmp.lt.s32.totalorder %s21, 0
      %s198 = scalar_select %p197, %s21, 0
      %s199 = sadd.s32 %s198, %s196
      %s200 = smul.addr %s199, 8
      %s201 = scalar_lea.vmem %s0, %s200
      %p202 = pneg %p56
      %p203 = pneg %p53
      %s204 = smul.u32 7, %s21
      %p205 = scmp.lt.s32.totalorder %s204, 6
      %s206 = scalar_select %p205, %s204, 6
      %p207 = scmp.lt.s32.totalorder %s20, 0
      %s208 = scalar_select %p207, %s20, 0
      %s209 = sadd.s32 %s208, %s206
      %s210 = smul.addr %s209, 8
      %s211 = scalar_lea.vmem %s1, %s210
      %p212 = pneg %p84
      %p213 = pneg %p81
      %p214 = scmp.lt.s32.totalorder %s20, 0
      %s215 = scalar_select %p214, %s20, 0
      %s216 = scalar_lea.vmem %s2, %s215
      %p217 = pneg %p110
      %p218 = pneg %p107
      %p219 = pneg %p138
      %p220 = pneg %p135
      %s221 = smul.u32 64, %s19
      %p222 = scmp.lt.s32.totalorder %s221, 255
      %s223 = scalar_select %p222, %s221, 255
      %p224 = scmp.lt.s32.totalorder %s20, 0
      %s225 = scalar_select %p224, %s20, 0
      %s226 = sadd.s32 %s225, %s223
      %s227 = smul.addr %s226, 8
      %s228 = scalar_lea.vmem %s3, %s227
      %s229 = smul.u32 64, %s19
      %p230 = scmp.lt.s32.totalorder %s229, 255
      %s231 = scalar_select %p230, %s229, 255
      %p232 = scmp.lt.s32.totalorder %s21, 0
      %s233 = scalar_select %p232, %s21, 0
      %s234 = sadd.s32 %s233, %s231
      %s235 = smul.addr %s234, 8
      %s236 = scalar_lea.vmem %s0, %s235
      %s237 = smul.u32 64, %s19
      %s238 = smul.u32 7, %s21
      %p239 = scmp.lt.s32.totalorder %s238, 6
      %s240 = scalar_select %p239, %s238, 6
      %p241 = scmp.lt.s32.totalorder %s20, 0
      %s242 = scalar_select %p241, %s20, 0
      %s243 = sadd.s32 %s242, %s240
      %s244 = smul.addr %s243, 8
      %s245 = scalar_lea.vmem %s1, %s244
      %s246 = smul.u32 7, %s21
      %p247 = scmp.lt.s32.totalorder %s20, 0
      %s248 = scalar_select %p247, %s20, 0
      %s249 = scalar_lea.vmem %s2, %s248
      %s250 = smul.u32 64, %s19
      %p251 = scmp.lt.s32.totalorder %s250, 255
      %s252 = scalar_select %p251, %s250, 255
      %p253 = scmp.lt.s32.totalorder %s20, 0
      %s254 = scalar_select %p253, %s20, 0
      %s255 = sadd.s32 %s254, %s252
      %s256 = smul.addr %s255, 8
      %s257 = scalar_lea.vmem %s3, %s256
      %s258 = smul.u32 64, %s19
      %p259 = scmp.eq.s32.totalorder %s21, 0
      // Predicated region
      $region33: #{tpu_custom_call.1} parent=31 // pred_check
        %p260 = pneg %p259
      $region34: #{tpu_custom_call.1} parent=31 // pred_check_branch
        %262 = sbr.rel (%p260) target = $region36
      $region35: #{tpu_custom_call.1} parent=31 // pred_region
        %vm263 = vcmask 523264
        %264 = vst.msk [vmem:[#allocation2] sm:$0xff] %vm263, 0.0
        %265 = vst.msk [vmem:[#allocation2 + $0x8] sm:$0xff] %vm263, 0.0
        %266 = vst.msk [vmem:[#allocation2 + $0x10] sm:$0xff] %vm263, 0.0
        %267 = vst.msk [vmem:[#allocation2 + $0x18] sm:$0xff] %vm263, 0.0
        %268 = vst.msk [vmem:[#allocation2 + $0x20] sm:$0xff] %vm263, 0.0
        %269 = vst.msk [vmem:[#allocation2 + $0x28] sm:$0xff] %vm263, 0.0
        %270 = vst.msk [vmem:[#allocation2 + $0x30] sm:$0xff] %vm263, 0.0
        %271 = vst.msk [vmem:[#allocation2 + $0x38] sm:$0xff] %vm263, 0.0
        %272 = vst.msk [vmem:[#allocation2 + $0x40] sm:$0xff] %vm263, 0.0
        %273 = vst.msk [vmem:[#allocation2 + $0x48] sm:$0xff] %vm263, 0.0
        %274 = vst.msk [vmem:[#allocation2 + $0x50] sm:$0xff] %vm263, 0.0
        %275 = vst.msk [vmem:[#allocation2 + $0x58] sm:$0xff] %vm263, 0.0
        %276 = vst.msk [vmem:[#allocation2 + $0x60] sm:$0xff] %vm263, 0.0
        %277 = vst.msk [vmem:[#allocation2 + $0x68] sm:$0xff] %vm263, 0.0
        %278 = vst.msk [vmem:[#allocation2 + $0x70] sm:$0xff] %vm263, 0.0
        %279 = vst.msk [vmem:[#allocation2 + $0x78] sm:$0xff] %vm263, 0.0
        %280 = vst.msk [vmem:[#allocation2 + $0x80] sm:$0xff] %vm263, 0.0
        %281 = vst.msk [vmem:[#allocation2 + $0x88] sm:$0xff] %vm263, 0.0
        %282 = vst.msk [vmem:[#allocation2 + $0x90] sm:$0xff] %vm263, 0.0
        %283 = vst.msk [vmem:[#allocation2 + $0x98] sm:$0xff] %vm263, 0.0
        %284 = vst.msk [vmem:[#allocation2 + $0xa0] sm:$0xff] %vm263, 0.0
        %285 = vst.msk [vmem:[#allocation2 + $0xa8] sm:$0xff] %vm263, 0.0
        %286 = vst.msk [vmem:[#allocation2 + $0xb0] sm:$0xff] %vm263, 0.0
        %287 = vst.msk [vmem:[#allocation2 + $0xb8] sm:$0xff] %vm263, 0.0
        %288 = vst.msk [vmem:[#allocation2 + $0xc0] sm:$0xff] %vm263, 0.0
        %289 = vst.msk [vmem:[#allocation2 + $0xc8] sm:$0xff] %vm263, 0.0
        %290 = vst.msk [vmem:[#allocation2 + $0xd0] sm:$0xff] %vm263, 0.0
        %291 = vst.msk [vmem:[#allocation2 + $0xd8] sm:$0xff] %vm263, 0.0
        %292 = vst.msk [vmem:[#allocation2 + $0xe0] sm:$0xff] %vm263, 0.0
        %293 = vst.msk [vmem:[#allocation2 + $0xe8] sm:$0xff] %vm263, 0.0
        %294 = vst.msk [vmem:[#allocation2 + $0xf0] sm:$0xff] %vm263, 0.0
        %295 = vst.msk [vmem:[#allocation2 + $0xf8] sm:$0xff] %vm263, 0.0
        %296 = vst.msk [vmem:[#allocation2 + $0x100] sm:$0xff] %vm263, 0.0
        %297 = vst.msk [vmem:[#allocation2 + $0x108] sm:$0xff] %vm263, 0.0
        %298 = vst.msk [vmem:[#allocation2 + $0x110] sm:$0xff] %vm263, 0.0
        %299 = vst.msk [vmem:[#allocation2 + $0x118] sm:$0xff] %vm263, 0.0
        %300 = vst.msk [vmem:[#allocation2 + $0x120] sm:$0xff] %vm263, 0.0
        %301 = vst.msk [vmem:[#allocation2 + $0x128] sm:$0xff] %vm263, 0.0
        %302 = vst.msk [vmem:[#allocation2 + $0x130] sm:$0xff] %vm263, 0.0
        %303 = vst.msk [vmem:[#allocation2 + $0x138] sm:$0xff] %vm263, 0.0
        %304 = vst.msk [vmem:[#allocation2 + $0x140] sm:$0xff] %vm263, 0.0
        %305 = vst.msk [vmem:[#allocation2 + $0x148] sm:$0xff] %vm263, 0.0
        %306 = vst.msk [vmem:[#allocation2 + $0x150] sm:$0xff] %vm263, 0.0
        %307 = vst.msk [vmem:[#allocation2 + $0x158] sm:$0xff] %vm263, 0.0
        %308 = vst.msk [vmem:[#allocation2 + $0x160] sm:$0xff] %vm263, 0.0
        %309 = vst.msk [vmem:[#allocation2 + $0x168] sm:$0xff] %vm263, 0.0
        %310 = vst.msk [vmem:[#allocation2 + $0x170] sm:$0xff] %vm263, 0.0
        %311 = vst.msk [vmem:[#allocation2 + $0x178] sm:$0xff] %vm263, 0.0
        %312 = vst.msk [vmem:[#allocation2 + $0x180] sm:$0xff] %vm263, 0.0
        %313 = vst.msk [vmem:[#allocation2 + $0x188] sm:$0xff] %vm263, 0.0
        %314 = vst.msk [vmem:[#allocation2 + $0x190] sm:$0xff] %vm263, 0.0
        %315 = vst.msk [vmem:[#allocation2 + $0x198] sm:$0xff] %vm263, 0.0
        %316 = vst.msk [vmem:[#allocation2 + $0x1a0] sm:$0xff] %vm263, 0.0
        %317 = vst.msk [vmem:[#allocation2 + $0x1a8] sm:$0xff] %vm263, 0.0
        %318 = vst.msk [vmem:[#allocation2 + $0x1b0] sm:$0xff] %vm263, 0.0
        %319 = vst.msk [vmem:[#allocation2 + $0x1b8] sm:$0xff] %vm263, 0.0
        %320 = vst.msk [vmem:[#allocation2 + $0x1c0] sm:$0xff] %vm263, 0.0
        %321 = vst.msk [vmem:[#allocation2 + $0x1c8] sm:$0xff] %vm263, 0.0
        %322 = vst.msk [vmem:[#allocation2 + $0x1d0] sm:$0xff] %vm263, 0.0
        %323 = vst.msk [vmem:[#allocation2 + $0x1d8] sm:$0xff] %vm263, 0.0
        %324 = vst.msk [vmem:[#allocation2 + $0x1e0] sm:$0xff] %vm263, 0.0
        %325 = vst.msk [vmem:[#allocation2 + $0x1e8] sm:$0xff] %vm263, 0.0
        %326 = vst.msk [vmem:[#allocation2 + $0x1f0] sm:$0xff] %vm263, 0.0
        %327 = vst.msk [vmem:[#allocation2 + $0x1f8] sm:$0xff] %vm263, 0.0
      $region36: #{tpu_custom_call.1} parent=31 // pred_fallthru
        _
      %v328 = vld [vmem:[#allocation2] sm:$0xff]
      %v329 = vld [vmem:[#allocation2 + $0x8] sm:$0xff]
      %v330 = vld [vmem:[#allocation2 + $0x10] sm:$0xff]
      %v331 = vld [vmem:[#allocation2 + $0x18] sm:$0xff]
      %v332 = vld [vmem:[#allocation2 + $0x20] sm:$0xff]
      %v333 = vld [vmem:[#allocation2 + $0x28] sm:$0xff]
      %v334 = vld [vmem:[#allocation2 + $0x30] sm:$0xff]
      %v335 = vld [vmem:[#allocation2 + $0x38] sm:$0xff]
      %v336 = vld [vmem:[#allocation2 + $0x40] sm:$0xff]
      %v337 = vld [vmem:[#allocation2 + $0x48] sm:$0xff]
      %v338 = vld [vmem:[#allocation2 + $0x50] sm:$0xff]
      %v339 = vld [vmem:[#allocation2 + $0x58] sm:$0xff]
      %v340 = vld [vmem:[#allocation2 + $0x60] sm:$0xff]
      %v341 = vld [vmem:[#allocation2 + $0x68] sm:$0xff]
      %v342 = vld [vmem:[#allocation2 + $0x70] sm:$0xff]
      %v343 = vld [vmem:[#allocation2 + $0x78] sm:$0xff]
      %v344 = vld [vmem:[#allocation2 + $0x80] sm:$0xff]
      %v345 = vld [vmem:[#allocation2 + $0x88] sm:$0xff]
      %v346 = vld [vmem:[#allocation2 + $0x90] sm:$0xff]
      %v347 = vld [vmem:[#allocation2 + $0x98] sm:$0xff]
      %v348 = vld [vmem:[#allocation2 + $0xa0] sm:$0xff]
      %v349 = vld [vmem:[#allocation2 + $0xa8] sm:$0xff]
      %v350 = vld [vmem:[#allocation2 + $0xb0] sm:$0xff]
      %v351 = vld [vmem:[#allocation2 + $0xb8] sm:$0xff]
      %v352 = vld [vmem:[#allocation2 + $0xc0] sm:$0xff]
      %v353 = vld [vmem:[#allocation2 + $0xc8] sm:$0xff]
      %v354 = vld [vmem:[#allocation2 + $0xd0] sm:$0xff]
      %v355 = vld [vmem:[#allocation2 + $0xd8] sm:$0xff]
      %v356 = vld [vmem:[#allocation2 + $0xe0] sm:$0xff]
      %v357 = vld [vmem:[#allocation2 + $0xe8] sm:$0xff]
      %v358 = vld [vmem:[#allocation2 + $0xf0] sm:$0xff]
      %v359 = vld [vmem:[#allocation2 + $0xf8] sm:$0xff]
      %v360 = vld [vmem:[#allocation2 + $0x100] sm:$0xff]
      %v361 = vld [vmem:[#allocation2 + $0x108] sm:$0xff]
      %v362 = vld [vmem:[#allocation2 + $0x110] sm:$0xff]
      %v363 = vld [vmem:[#allocation2 + $0x118] sm:$0xff]
      %v364 = vld [vmem:[#allocation2 + $0x120] sm:$0xff]
      %v365 = vld [vmem:[#allocation2 + $0x128] sm:$0xff]
      %v366 = vld [vmem:[#allocation2 + $0x130] sm:$0xff]
      %v367 = vld [vmem:[#allocation2 + $0x138] sm:$0xff]
      %v368 = vld [vmem:[#allocation2 + $0x140] sm:$0xff]
      %v369 = vld [vmem:[#allocation2 + $0x148] sm:$0xff]
      %v370 = vld [vmem:[#allocation2 + $0x150] sm:$0xff]
      %v371 = vld [vmem:[#allocation2 + $0x158] sm:$0xff]
      %v372 = vld [vmem:[#allocation2 + $0x160] sm:$0xff]
      %v373 = vld [vmem:[#allocation2 + $0x168] sm:$0xff]
      %v374 = vld [vmem:[#allocation2 + $0x170] sm:$0xff]
      %v375 = vld [vmem:[#allocation2 + $0x178] sm:$0xff]
      %v376 = vld [vmem:[#allocation2 + $0x180] sm:$0xff]
      %v377 = vld [vmem:[#allocation2 + $0x188] sm:$0xff]
      %v378 = vld [vmem:[#allocation2 + $0x190] sm:$0xff]
      %v379 = vld [vmem:[#allocation2 + $0x198] sm:$0xff]
      %v380 = vld [vmem:[#allocation2 + $0x1a0] sm:$0xff]
      %v381 = vld [vmem:[#allocation2 + $0x1a8] sm:$0xff]
      %v382 = vld [vmem:[#allocation2 + $0x1b0] sm:$0xff]
      %v383 = vld [vmem:[#allocation2 + $0x1b8] sm:$0xff]
      %v384 = vld [vmem:[#allocation2 + $0x1c0] sm:$0xff]
      %v385 = vld [vmem:[#allocation2 + $0x1c8] sm:$0xff]
      %v386 = vld [vmem:[#allocation2 + $0x1d0] sm:$0xff]
      %v387 = vld [vmem:[#allocation2 + $0x1d8] sm:$0xff]
      %v388 = vld [vmem:[#allocation2 + $0x1e0] sm:$0xff]
      %v389 = vld [vmem:[#allocation2 + $0x1e8] sm:$0xff]
      %v390 = vld [vmem:[#allocation2 + $0x1f0] sm:$0xff]
      %v391 = vld [vmem:[#allocation2 + $0x1f8] sm:$0xff]
      %v392 = vld [vmem:[%s236] sm:$0xff]
      %v393 = vld [vmem:[%s236 + $0x8] sm:$0xff]
      %v394 = vld [vmem:[%s236 + $0x10] sm:$0xff]
      %v395 = vld [vmem:[%s236 + $0x18] sm:$0xff]
      %v396 = vld [vmem:[%s236 + $0x20] sm:$0xff]
      %v397 = vld [vmem:[%s236 + $0x28] sm:$0xff]
      %v398 = vld [vmem:[%s236 + $0x30] sm:$0xff]
      %v399 = vld [vmem:[%s236 + $0x38] sm:$0xff]
      %v400 = vld [vmem:[%s236 + $0x40] sm:$0xff]
      %v401 = vld [vmem:[%s236 + $0x48] sm:$0xff]
      %v402 = vld [vmem:[%s236 + $0x50] sm:$0xff]
      %v403 = vld [vmem:[%s236 + $0x58] sm:$0xff]
      %v404 = vld [vmem:[%s236 + $0x60] sm:$0xff]
      %v405 = vld [vmem:[%s236 + $0x68] sm:$0xff]
      %v406 = vld [vmem:[%s236 + $0x70] sm:$0xff]
      %v407 = vld [vmem:[%s236 + $0x78] sm:$0xff]
      %v408 = vld [vmem:[%s236 + $0x80] sm:$0xff]
      %v409 = vld [vmem:[%s236 + $0x88] sm:$0xff]
      %v410 = vld [vmem:[%s236 + $0x90] sm:$0xff]
      %v411 = vld [vmem:[%s236 + $0x98] sm:$0xff]
      %v412 = vld [vmem:[%s236 + $0xa0] sm:$0xff]
      %v413 = vld [vmem:[%s236 + $0xa8] sm:$0xff]
      %v414 = vld [vmem:[%s236 + $0xb0] sm:$0xff]
      %v415 = vld [vmem:[%s236 + $0xb8] sm:$0xff]
      %v416 = vld [vmem:[%s236 + $0xc0] sm:$0xff]
      %v417 = vld [vmem:[%s236 + $0xc8] sm:$0xff]
      %v418 = vld [vmem:[%s236 + $0xd0] sm:$0xff]
      %v419 = vld [vmem:[%s236 + $0xd8] sm:$0xff]
      %v420 = vld [vmem:[%s236 + $0xe0] sm:$0xff]
      %v421 = vld [vmem:[%s236 + $0xe8] sm:$0xff]
      %v422 = vld [vmem:[%s236 + $0xf0] sm:$0xff]
      %v423 = vld [vmem:[%s236 + $0xf8] sm:$0xff]
      %v424 = vld [vmem:[%s236 + $0x100] sm:$0xff]
      %v425 = vld [vmem:[%s236 + $0x108] sm:$0xff]
      %v426 = vld [vmem:[%s236 + $0x110] sm:$0xff]
      %v427 = vld [vmem:[%s236 + $0x118] sm:$0xff]
      %v428 = vld [vmem:[%s236 + $0x120] sm:$0xff]
      %v429 = vld [vmem:[%s236 + $0x128] sm:$0xff]
      %v430 = vld [vmem:[%s236 + $0x130] sm:$0xff]
      %v431 = vld [vmem:[%s236 + $0x138] sm:$0xff]
      %v432 = vld [vmem:[%s236 + $0x140] sm:$0xff]
      %v433 = vld [vmem:[%s236 + $0x148] sm:$0xff]
      %v434 = vld [vmem:[%s236 + $0x150] sm:$0xff]
      %v435 = vld [vmem:[%s236 + $0x158] sm:$0xff]
      %v436 = vld [vmem:[%s236 + $0x160] sm:$0xff]
      %v437 = vld [vmem:[%s236 + $0x168] sm:$0xff]
      %v438 = vld [vmem:[%s236 + $0x170] sm:$0xff]
      %v439 = vld [vmem:[%s236 + $0x178] sm:$0xff]
      %v440 = vld [vmem:[%s236 + $0x180] sm:$0xff]
      %v441 = vld [vmem:[%s236 + $0x188] sm:$0xff]
      %v442 = vld [vmem:[%s236 + $0x190] sm:$0xff]
      %v443 = vld [vmem:[%s236 + $0x198] sm:$0xff]
      %v444 = vld [vmem:[%s236 + $0x1a0] sm:$0xff]
      %v445 = vld [vmem:[%s236 + $0x1a8] sm:$0xff]
      %v446 = vld [vmem:[%s236 + $0x1b0] sm:$0xff]
      %v447 = vld [vmem:[%s236 + $0x1b8] sm:$0xff]
      %v448 = vld [vmem:[%s236 + $0x1c0] sm:$0xff]
      %v449 = vld [vmem:[%s236 + $0x1c8] sm:$0xff]
      %v450 = vld [vmem:[%s236 + $0x1d0] sm:$0xff]
      %v451 = vld [vmem:[%s236 + $0x1d8] sm:$0xff]
      %v452 = vld [vmem:[%s236 + $0x1e0] sm:$0xff]
      %v453 = vld [vmem:[%s236 + $0x1e8] sm:$0xff]
      %v454 = vld [vmem:[%s236 + $0x1f0] sm:$0xff]
      %v455 = vld [vmem:[%s236 + $0x1f8] sm:$0xff]
      %v456 = vld [vmem:[%s245] sm:$0xff]
      %v457 = vld [vmem:[%s245 + $0x8] sm:$0xff]
      %v458 = vld [vmem:[%s245 + $0x10] sm:$0xff]
      %v459 = vld [vmem:[%s245 + $0x18] sm:$0xff]
      %v460 = vld [vmem:[%s245 + $0x20] sm:$0xff]
      %v461 = vld [vmem:[%s245 + $0x28] sm:$0xff]
      %v462 = vld [vmem:[%s245 + $0x30] sm:$0x1]
      %vm463 = vcmask 400384
      %v465 = vsel %vm463, %v392, 0
      %v468 = vsel %vm463, %v393, 0
      %v471 = vsel %vm463, %v394, 0
      %v474 = vsel %vm463, %v395, 0
      %v477 = vsel %vm463, %v396, 0
      %v480 = vsel %vm463, %v397, 0
      %v483 = vsel %vm463, %v398, 0
      %v486 = vsel %vm463, %v399, 0
      %v489 = vsel %vm463, %v400, 0
      %v492 = vsel %vm463, %v401, 0
      %v495 = vsel %vm463, %v402, 0
      %v498 = vsel %vm463, %v403, 0
      %v501 = vsel %vm463, %v404, 0
      %v504 = vsel %vm463, %v405, 0
      %v507 = vsel %vm463, %v406, 0
      %v510 = vsel %vm463, %v407, 0
      %v513 = vsel %vm463, %v408, 0
      %v516 = vsel %vm463, %v409, 0
      %v519 = vsel %vm463, %v410, 0
      %v522 = vsel %vm463, %v411, 0
      %v525 = vsel %vm463, %v412, 0
      %v528 = vsel %vm463, %v413, 0
      %v531 = vsel %vm463, %v414, 0
      %v534 = vsel %vm463, %v415, 0
      %v537 = vsel %vm463, %v416, 0
      %v540 = vsel %vm463, %v417, 0
      %v543 = vsel %vm463, %v418, 0
      %v546 = vsel %vm463, %v419, 0
      %v549 = vsel %vm463, %v420, 0
      %v552 = vsel %vm463, %v421, 0
      %v555 = vsel %vm463, %v422, 0
      %v558 = vsel %vm463, %v423, 0
      %v561 = vsel %vm463, %v424, 0
      %v564 = vsel %vm463, %v425, 0
      %v567 = vsel %vm463, %v426, 0
      %v570 = vsel %vm463, %v427, 0
      %v573 = vsel %vm463, %v428, 0
      %v576 = vsel %vm463, %v429, 0
      %v579 = vsel %vm463, %v430, 0
      %v582 = vsel %vm463, %v431, 0
      %v585 = vsel %vm463, %v432, 0
      %v588 = vsel %vm463, %v433, 0
      %v591 = vsel %vm463, %v434, 0
      %v594 = vsel %vm463, %v435, 0
      %v597 = vsel %vm463, %v436, 0
      %v600 = vsel %vm463, %v437, 0
      %v603 = vsel %vm463, %v438, 0
      %v606 = vsel %vm463, %v439, 0
      %v609 = vsel %vm463, %v440, 0
      %v612 = vsel %vm463, %v441, 0
      %v615 = vsel %vm463, %v442, 0
      %v618 = vsel %vm463, %v443, 0
      %v621 = vsel %vm463, %v444, 0
      %v624 = vsel %vm463, %v445, 0
      %v627 = vsel %vm463, %v446, 0
      %v630 = vsel %vm463, %v447, 0
      %v633 = vsel %vm463, %v448, 0
      %v636 = vsel %vm463, %v449, 0
      %v639 = vsel %vm463, %v450, 0
      %v642 = vsel %vm463, %v451, 0
      %v645 = vsel %vm463, %v452, 0
      %v648 = vsel %vm463, %v453, 0
      %v651 = vsel %vm463, %v454, 0
      %v654 = vsel %vm463, %v455, 0
      %vm656 = vcmask 1040384
      %v658 = vsel %vm656, %v462, 0
      %660 = vmatprep.subr.mxu0 0.0
      %661 = vmatpush1.msra.mxu0 %v456
      %662 = vmatprep.subr.mxu0 0.0
      %663 = vmatpush1.msra.mxu0 %v457
      %664 = vmatprep.subr.mxu0 0.0
      %665 = vmatpush1.msra.mxu0 %v458
      %666 = vmatprep.subr.mxu0 0.0
      %667 = vmatpush1.msra.mxu0 %v459
      %668 = vmatprep.subr.mxu0 0.0
      %669 = vmatpush1.msra.mxu0 %v460
      %670 = vmatprep.subr.mxu0 0.0
      %671 = vmatpush1.msra.mxu0 %v461
      %672 = vmatprep.subr.mxu0 0.0
      %673 = vmatpush1.msra.mxu0 %v658
      %674 = vmatprep.subr.mxu0 0.0
      %675 = vmatpush1.msra.mxu0 0.0
      %676 = vmatprep.subr.mxu0 0.0
      %677 = vmatpush1.msra.mxu0 0.0
      %678 = vmatprep.subr.mxu0 0.0
      %679 = vmatpush1.msra.mxu0 0.0
      %680 = vmatprep.subr.mxu0 0.0
      %681 = vmatpush1.msra.mxu0 0.0
      %682 = vmatprep.subr.mxu0 0.0
      %683 = vmatpush1.msra.mxu0 0.0
      %684 = vmatprep.subr.mxu0 0.0
      %685 = vmatpush1.msra.mxu0 0.0
      %686 = vmatprep.subr.mxu0 0.0
      %687 = vmatpush1.msra.mxu0 0.0
      %688 = vmatprep.subr.mxu0 0.0
      %689 = vmatpush1.msra.mxu0 0.0
      %690 = vmatprep.subr.mxu0 0.0
      %691 = vmatpush1.msra.mxu0 0.0
      %692 = vmatprep.subr.mxu0 0.0
      %693 = vmatpush1.msra.mxu0 0.0
      %694 = vmatprep.subr.mxu0 0.0
      %695 = vmatpush1.msra.mxu0 0.0
      %696 = vmatprep.subr.mxu0 0.0
      %697 = vmatpush1.msra.mxu0 0.0
      %698 = vmatprep.subr.mxu0 0.0
      %699 = vmatpush1.msra.mxu0 0.0
      %700 = vmatprep.subr.mxu0 0.0
      %701 = vmatpush1.msra.mxu0 0.0
      %702 = vmatprep.subr.mxu0 0.0
      %703 = vmatpush1.msra.mxu0 0.0
      %704 = vmatprep.subr.mxu0 0.0
      %705 = vmatpush1.msra.mxu0 0.0
      %706 = vmatprep.subr.mxu0 0.0
      %707 = vmatpush1.msra.mxu0 0.0
      %708 = vmatprep.subr.mxu0 0.0
      %709 = vmatpush1.msra.mxu0 0.0
      %710 = vmatprep.subr.mxu0 0.0
      %711 = vmatpush1.msra.mxu0 0.0
      %712 = vmatprep.subr.mxu0 0.0
      %713 = vmatpush1.msra.mxu0 0.0
      %714 = vmatprep.subr.mxu0 0.0
      %715 = vmatpush1.msra.mxu0 0.0
      %716 = vmatprep.subr.mxu0 0.0
      %717 = vmatpush1.msra.mxu0 0.0
      %718 = vmatprep.subr.mxu0 0.0
      %719 = vmatpush1.msra.mxu0 0.0
      %720 = vmatprep.subr.mxu0 0.0
      %721 = vmatpush1.msra.mxu0 0.0
      %722 = vmatprep.subr.mxu0 0.0
      %723 = vmatpush1.msra.mxu0 0.0
      %724 = vmatprep.mubr.f32.mxu0 0.0
      %725 = vmatmul.mubr.f32.gmra.mrb[0].mxu0 %v465
      %v726 = vpop.f32.mrb[0].mxu0
      %v727 = vadd.f32 0.0, %v726
      %v728 = vpop.f32.mrb[0].mxu0
      %729 = vmatprep.mubr.f32.mxu0 0.0
      %730 = vmatmul.mubr.f32.gmra.mrb[0].mxu0 %v468
      %v731 = vpop.f32.mrb[0].mxu0
      %v732 = vadd.f32 0.0, %v731
      %v733 = vpop.f32.mrb[0].mxu0
      %734 = vmatprep.mubr.f32.mxu0 0.0
      %735 = vmatmul.mubr.f32.gmra.mrb[0].mxu0 %v471
      %v736 = vpop.f32.mrb[0].mxu0
      %v737 = vadd.f32 0.0, %v736
      %v738 = vpop.f32.mrb[0].mxu0
      %739 = vmatprep.mubr.f32.mxu0 0.0
      %740 = vmatmul.mubr.f32.gmra.mrb[0].mxu0 %v474
      %v741 = vpop.f32.mrb[0].mxu0
      %v742 = vadd.f32 0.0, %v741
      %v743 = vpop.f32.mrb[0].mxu0
      %744 = vmatprep.mubr.f32.mxu0 0.0
      %745 = vmatmul.mubr.f32.gmra.mrb[0].mxu0 %v477
      %v746 = vpop.f32.mrb[0].mxu0
      %v747 = vadd.f32 0.0, %v746
      %v748 = vpop.f32.mrb[0].mxu0
      %749 = vmatprep.mubr.f32.mxu0 0.0
      %750 = vmatmul.mubr.f32.gmra.mrb[0].mxu0 %v480
      %v751 = vpop.f32.mrb[0].mxu0
      %v752 = vadd.f32 0.0, %v751
      %v753 = vpop.f32.mrb[0].mxu0
      %754 = vmatprep.mubr.f32.mxu0 0.0
      %755 = vmatmul.mubr.f32.gmra.mrb[0].mxu0 %v483
      %v756 = vpop.f32.mrb[0].mxu0
      %v757 = vadd.f32 0.0, %v756
      %v758 = vpop.f32.mrb[0].mxu0
      %759 = vmatprep.mubr.f32.mxu0 0.0
      %760 = vmatmul.mubr.f32.gmra.mrb[0].mxu0 %v486
      %v761 = vpop.f32.mrb[0].mxu0
      %v762 = vadd.f32 0.0, %v761
      %v763 = vpop.f32.mrb[0].mxu0
      %764 = vmatprep.mubr.f32.mxu0 0.0
      %765 = vmatmul.mubr.f32.gmra.mrb[0].mxu0 %v489
      %v766 = vpop.f32.mrb[0].mxu0
      %v767 = vadd.f32 0.0, %v766
      %v768 = vpop.f32.mrb[0].mxu0
      %769 = vmatprep.mubr.f32.mxu0 0.0
      %770 = vmatmul.mubr.f32.gmra.mrb[0].mxu0 %v492
      %v771 = vpop.f32.mrb[0].mxu0
      %v772 = vadd.f32 0.0, %v771
      %v773 = vpop.f32.mrb[0].mxu0
      %774 = vmatprep.mubr.f32.mxu0 0.0
      %775 = vmatmul.mubr.f32.gmra.mrb[0].mxu0 %v495
      %v776 = vpop.f32.mrb[0].mxu0
      %v777 = vadd.f32 0.0, %v776
      %v778 = vpop.f32.mrb[0].mxu0
      %779 = vmatprep.mubr.f32.mxu0 0.0
      %780 = vmatmul.mubr.f32.gmra.mrb[0].mxu0 %v498
      %v781 = vpop.f32.mrb[0].mxu0
      %v782 = vadd.f32 0.0, %v781
      %v783 = vpop.f32.mrb[0].mxu0
      %784 = vmatprep.mubr.f32.mxu0 0.0
      %785 = vmatmul.mubr.f32.gmra.mrb[0].mxu0 %v501
      %v786 = vpop.f32.mrb[0].mxu0
      %v787 = vadd.f32 0.0, %v786
      %v788 = vpop.f32.mrb[0].mxu0
      %789 = vmatprep.mubr.f32.mxu0 0.0
      %790 = vmatmul.mubr.f32.gmra.mrb[0].mxu0 %v504
      %v791 = vpop.f32.mrb[0].mxu0
      %v792 = vadd.f32 0.0, %v791
      %v793 = vpop.f32.mrb[0].mxu0
      %794 = vmatprep.mubr.f32.mxu0 0.0
      %795 = vmatmul.mubr.f32.gmra.mrb[0].mxu0 %v507
      %v796 = vpop.f32.mrb[0].mxu0
      %v797 = vadd.f32 0.0, %v796
      %v798 = vpop.f32.mrb[0].mxu0
      %799 = vmatprep.mubr.f32.mxu0 0.0
      %800 = vmatmul.mubr.f32.gmra.mrb[0].mxu0 %v510
      %v801 = vpop.f32.mrb[0].mxu0
      %v802 = vadd.f32 0.0, %v801
      %v803 = vpop.f32.mrb[0].mxu0
      %804 = vmatprep.mubr.f32.mxu0 0.0
      %805 = vmatmul.mubr.f32.gmra.mrb[0].mxu0 %v513
      %v806 = vpop.f32.mrb[0].mxu0
      %v807 = vadd.f32 0.0, %v806
      %v808 = vpop.f32.mrb[0].mxu0
      %809 = vmatprep.mubr.f32.mxu0 0.0
      %810 = vmatmul.mubr.f32.gmra.mrb[0].mxu0 %v516
      %v811 = vpop.f32.mrb[0].mxu0
      %v812 = vadd.f32 0.0, %v811
      %v813 = vpop.f32.mrb[0].mxu0
      %814 = vmatprep.mubr.f32.mxu0 0.0
      %815 = vmatmul.mubr.f32.gmra.mrb[0].mxu0 %v519
      %v816 = vpop.f32.mrb[0].mxu0
      %v817 = vadd.f32 0.0, %v816
      %v818 = vpop.f32.mrb[0].mxu0
      %819 = vmatprep.mubr.f32.mxu0 0.0
      %820 = vmatmul.mubr.f32.gmra.mrb[0].mxu0 %v522
      %v821 = vpop.f32.mrb[0].mxu0
      %v822 = vadd.f32 0.0, %v821
      %v823 = vpop.f32.mrb[0].mxu0
      %824 = vmatprep.mubr.f32.mxu0 0.0
      %825 = vmatmul.mubr.f32.gmra.mrb[0].mxu0 %v525
      %v826 = vpop.f32.mrb[0].mxu0
      %v827 = vadd.f32 0.0, %v826
      %v828 = vpop.f32.mrb[0].mxu0
      %829 = vmatprep.mubr.f32.mxu0 0.0
      %830 = vmatmul.mubr.f32.gmra.mrb[0].mxu0 %v528
      %v831 = vpop.f32.mrb[0].mxu0
      %v832 = vadd.f32 0.0, %v831
      %v833 = vpop.f32.mrb[0].mxu0
      %834 = vmatprep.mubr.f32.mxu0 0.0
      %835 = vmatmul.mubr.f32.gmra.mrb[0].mxu0 %v531
      %v836 = vpop.f32.mrb[0].mxu0
      %v837 = vadd.f32 0.0, %v836
      %v838 = vpop.f32.mrb[0].mxu0
      %839 = vmatprep.mubr.f32.mxu0 0.0
      %840 = vmatmul.mubr.f32.gmra.mrb[0].mxu0 %v534
      %v841 = vpop.f32.mrb[0].mxu0
      %v842 = vadd.f32 0.0, %v841
      %v843 = vpop.f32.mrb[0].mxu0
      %844 = vmatprep.mubr.f32.mxu0 0.0
      %845 = vmatmul.mubr.f32.gmra.mrb[0].mxu0 %v537
      %v846 = vpop.f32.mrb[0].mxu0
      %v847 = vadd.f32 0.0, %v846
      %v848 = vpop.f32.mrb[0].mxu0
      %849 = vmatprep.mubr.f32.mxu0 0.0
      %850 = vmatmul.mubr.f32.gmra.mrb[0].mxu0 %v540
      %v851 = vpop.f32.mrb[0].mxu0
      %v852 = vadd.f32 0.0, %v851
      %v853 = vpop.f32.mrb[0].mxu0
      %854 = vmatprep.mubr.f32.mxu0 0.0
      %855 = vmatmul.mubr.f32.gmra.mrb[0].mxu0 %v543
      %v856 = vpop.f32.mrb[0].mxu0
      %v857 = vadd.f32 0.0, %v856
      %v858 = vpop.f32.mrb[0].mxu0
      %859 = vmatprep.mubr.f32.mxu0 0.0
      %860 = vmatmul.mubr.f32.gmra.mrb[0].mxu0 %v546
      %v861 = vpop.f32.mrb[0].mxu0
      %v862 = vadd.f32 0.0, %v861
      %v863 = vpop.f32.mrb[0].mxu0
      %864 = vmatprep.mubr.f32.mxu0 0.0
      %865 = vmatmul.mubr.f32.gmra.mrb[0].mxu0 %v549
      %v866 = vpop.f32.mrb[0].mxu0
      %v867 = vadd.f32 0.0, %v866
      %v868 = vpop.f32.mrb[0].mxu0
      %869 = vmatprep.mubr.f32.mxu0 0.0
      %870 = vmatmul.mubr.f32.gmra.mrb[0].mxu0 %v552
      %v871 = vpop.f32.mrb[0].mxu0
      %v872 = vadd.f32 0.0, %v871
      %v873 = vpop.f32.mrb[0].mxu0
      %874 = vmatprep.mubr.f32.mxu0 0.0
      %875 = vmatmul.mubr.f32.gmra.mrb[0].mxu0 %v555
      %v876 = vpop.f32.mrb[0].mxu0
      %v877 = vadd.f32 0.0, %v876
      %v878 = vpop.f32.mrb[0].mxu0
      %879 = vmatprep.mubr.f32.mxu0 0.0
      %880 = vmatmul.mubr.f32.gmra.mrb[0].mxu0 %v558
      %v881 = vpop.f32.mrb[0].mxu0
      %v882 = vadd.f32 0.0, %v881
      %v883 = vpop.f32.mrb[0].mxu0
      %884 = vmatprep.mubr.f32.mxu0 0.0
      %885 = vmatmul.mubr.f32.gmra.mrb[0].mxu0 %v561
      %v886 = vpop.f32.mrb[0].mxu0
      %v887 = vadd.f32 0.0, %v886
      %v888 = vpop.f32.mrb[0].mxu0
      %889 = vmatprep.mubr.f32.mxu0 0.0
      %890 = vmatmul.mubr.f32.gmra.mrb[0].mxu0 %v564
      %v891 = vpop.f32.mrb[0].mxu0
      %v892 = vadd.f32 0.0, %v891
      %v893 = vpop.f32.mrb[0].mxu0
      %894 = vmatprep.mubr.f32.mxu0 0.0
      %895 = vmatmul.mubr.f32.gmra.mrb[0].mxu0 %v567
      %v896 = vpop.f32.mrb[0].mxu0
      %v897 = vadd.f32 0.0, %v896
      %v898 = vpop.f32.mrb[0].mxu0
      %899 = vmatprep.mubr.f32.mxu0 0.0
      %900 = vmatmul.mubr.f32.gmra.mrb[0].mxu0 %v570
      %v901 = vpop.f32.mrb[0].mxu0
      %v902 = vadd.f32 0.0, %v901
      %v903 = vpop.f32.mrb[0].mxu0
      %904 = vmatprep.mubr.f32.mxu0 0.0
      %905 = vmatmul.mubr.f32.gmra.mrb[0].mxu0 %v573
      %v906 = vpop.f32.mrb[0].mxu0
      %v907 = vadd.f32 0.0, %v906
      %v908 = vpop.f32.mrb[0].mxu0
      %909 = vmatprep.mubr.f32.mxu0 0.0
      %910 = vmatmul.mubr.f32.gmra.mrb[0].mxu0 %v576
      %v911 = vpop.f32.mrb[0].mxu0
      %v912 = vadd.f32 0.0, %v911
      %v913 = vpop.f32.mrb[0].mxu0
      %914 = vmatprep.mubr.f32.mxu0 0.0
      %915 = vmatmul.mubr.f32.gmra.mrb[0].mxu0 %v579
      %v916 = vpop.f32.mrb[0].mxu0
      %v917 = vadd.f32 0.0, %v916
      %v918 = vpop.f32.mrb[0].mxu0
      %919 = vmatprep.mubr.f32.mxu0 0.0
      %920 = vmatmul.mubr.f32.gmra.mrb[0].mxu0 %v582
      %v921 = vpop.f32.mrb[0].mxu0
      %v922 = vadd.f32 0.0, %v921
      %v923 = vpop.f32.mrb[0].mxu0
      %924 = vmatprep.mubr.f32.mxu0 0.0
      %925 = vmatmul.mubr.f32.gmra.mrb[0].mxu0 %v585
      %v926 = vpop.f32.mrb[0].mxu0
      %v927 = vadd.f32 0.0, %v926
      %v928 = vpop.f32.mrb[0].mxu0
      %929 = vmatprep.mubr.f32.mxu0 0.0
      %930 = vmatmul.mubr.f32.gmra.mrb[0].mxu0 %v588
      %v931 = vpop.f32.mrb[0].mxu0
      %v932 = vadd.f32 0.0, %v931
      %v933 = vpop.f32.mrb[0].mxu0
      %934 = vmatprep.mubr.f32.mxu0 0.0
      %935 = vmatmul.mubr.f32.gmra.mrb[0].mxu0 %v591
      %v936 = vpop.f32.mrb[0].mxu0
      %v937 = vadd.f32 0.0, %v936
      %v938 = vpop.f32.mrb[0].mxu0
      %939 = vmatprep.mubr.f32.mxu0 0.0
      %940 = vmatmul.mubr.f32.gmra.mrb[0].mxu0 %v594
      %v941 = vpop.f32.mrb[0].mxu0
      %v942 = vadd.f32 0.0, %v941
      %v943 = vpop.f32.mrb[0].mxu0
      %944 = vmatprep.mubr.f32.mxu0 0.0
      %945 = vmatmul.mubr.f32.gmra.mrb[0].mxu0 %v597
      %v946 = vpop.f32.mrb[0].mxu0
      %v947 = vadd.f32 0.0, %v946
      %v948 = vpop.f32.mrb[0].mxu0
      %949 = vmatprep.mubr.f32.mxu0 0.0
      %950 = vmatmul.mubr.f32.gmra.mrb[0].mxu0 %v600
      %v951 = vpop.f32.mrb[0].mxu0
      %v952 = vadd.f32 0.0, %v951
      %v953 = vpop.f32.mrb[0].mxu0
      %954 = vmatprep.mubr.f32.mxu0 0.0
      %955 = vmatmul.mubr.f32.gmra.mrb[0].mxu0 %v603
      %v956 = vpop.f32.mrb[0].mxu0
      %v957 = vadd.f32 0.0, %v956
      %v958 = vpop.f32.mrb[0].mxu0
      %959 = vmatprep.mubr.f32.mxu0 0.0
      %960 = vmatmul.mubr.f32.gmra.mrb[0].mxu0 %v606
      %v961 = vpop.f32.mrb[0].mxu0
      %v962 = vadd.f32 0.0, %v961
      %v963 = vpop.f32.mrb[0].mxu0
      %964 = vmatprep.mubr.f32.mxu0 0.0
      %965 = vmatmul.mubr.f32.gmra.mrb[0].mxu0 %v609
      %v966 = vpop.f32.mrb[0].mxu0
      %v967 = vadd.f32 0.0, %v966
      %v968 = vpop.f32.mrb[0].mxu0
      %969 = vmatprep.mubr.f32.mxu0 0.0
      %970 = vmatmul.mubr.f32.gmra.mrb[0].mxu0 %v612
      %v971 = vpop.f32.mrb[0].mxu0
      %v972 = vadd.f32 0.0, %v971
      %v973 = vpop.f32.mrb[0].mxu0
      %974 = vmatprep.mubr.f32.mxu0 0.0
      %975 = vmatmul.mubr.f32.gmra.mrb[0].mxu0 %v615
      %v976 = vpop.f32.mrb[0].mxu0
      %v977 = vadd.f32 0.0, %v976
      %v978 = vpop.f32.mrb[0].mxu0
      %979 = vmatprep.mubr.f32.mxu0 0.0
      %980 = vmatmul.mubr.f32.gmra.mrb[0].mxu0 %v618
      %v981 = vpop.f32.mrb[0].mxu0
      %v982 = vadd.f32 0.0, %v981
      %v983 = vpop.f32.mrb[0].mxu0
      %984 = vmatprep.mubr.f32.mxu0 0.0
      %985 = vmatmul.mubr.f32.gmra.mrb[0].mxu0 %v621
      %v986 = vpop.f32.mrb[0].mxu0
      %v987 = vadd.f32 0.0, %v986
      %v988 = vpop.f32.mrb[0].mxu0
      %989 = vmatprep.mubr.f32.mxu0 0.0
      %990 = vmatmul.mubr.f32.gmra.mrb[0].mxu0 %v624
      %v991 = vpop.f32.mrb[0].mxu0
      %v992 = vadd.f32 0.0, %v991
      %v993 = vpop.f32.mrb[0].mxu0
      %994 = vmatprep.mubr.f32.mxu0 0.0
      %995 = vmatmul.mubr.f32.gmra.mrb[0].mxu0 %v627
      %v996 = vpop.f32.mrb[0].mxu0
      %v997 = vadd.f32 0.0, %v996
      %v998 = vpop.f32.mrb[0].mxu0
      %999 = vmatprep.mubr.f32.mxu0 0.0
      %1000 = vmatmul.mubr.f32.gmra.mrb[0].mxu0 %v630
      %v1001 = vpop.f32.mrb[0].mxu0
      %v1002 = vadd.f32 0.0, %v1001
      %v1003 = vpop.f32.mrb[0].mxu0
      %1004 = vmatprep.mubr.f32.mxu0 0.0
      %1005 = vmatmul.mubr.f32.gmra.mrb[0].mxu0 %v633
      %v1006 = vpop.f32.mrb[0].mxu0
      %v1007 = vadd.f32 0.0, %v1006
      %v1008 = vpop.f32.mrb[0].mxu0
      %1009 = vmatprep.mubr.f32.mxu0 0.0
      %1010 = vmatmul.mubr.f32.gmra.mrb[0].mxu0 %v636
      %v1011 = vpop.f32.mrb[0].mxu0
      %v1012 = vadd.f32 0.0, %v1011
      %v1013 = vpop.f32.mrb[0].mxu0
      %1014 = vmatprep.mubr.f32.mxu0 0.0
      %1015 = vmatmul.mubr.f32.gmra.mrb[0].mxu0 %v639
      %v1016 = vpop.f32.mrb[0].mxu0
      %v1017 = vadd.f32 0.0, %v1016
      %v1018 = vpop.f32.mrb[0].mxu0
      %1019 = vmatprep.mubr.f32.mxu0 0.0
      %1020 = vmatmul.mubr.f32.gmra.mrb[0].mxu0 %v642
      %v1021 = vpop.f32.mrb[0].mxu0
      %v1022 = vadd.f32 0.0, %v1021
      %v1023 = vpop.f32.mrb[0].mxu0
      %1024 = vmatprep.mubr.f32.mxu0 0.0
      %1025 = vmatmul.mubr.f32.gmra.mrb[0].mxu0 %v645
      %v1026 = vpop.f32.mrb[0].mxu0
      %v1027 = vadd.f32 0.0, %v1026
      %v1028 = vpop.f32.mrb[0].mxu0
      %1029 = vmatprep.mubr.f32.mxu0 0.0
      %1030 = vmatmul.mubr.f32.gmra.mrb[0].mxu0 %v648
      %v1031 = vpop.f32.mrb[0].mxu0
      %v1032 = vadd.f32 0.0, %v1031
      %v1033 = vpop.f32.mrb[0].mxu0
      %1034 = vmatprep.mubr.f32.mxu0 0.0
      %1035 = vmatmul.mubr.f32.gmra.mrb[0].mxu0 %v651
      %v1036 = vpop.f32.mrb[0].mxu0
      %v1037 = vadd.f32 0.0, %v1036
      %v1038 = vpop.f32.mrb[0].mxu0
      %1039 = vmatprep.mubr.f32.mxu0 0.0
      %1040 = vmatmul.mubr.f32.gmra.mrb[0].mxu0 %v654
      %v1041 = vpop.f32.mrb[0].mxu0
      %v1042 = vadd.f32 0.0, %v1041
      %v1043 = vpop.f32.mrb[0].mxu0
      %1044 = vdwg.mxu0
      %v1045 = vadd.f32 %v328, %v727
      %v1046 = vadd.f32 %v329, %v732
      %v1047 = vadd.f32 %v330, %v737
      %v1048 = vadd.f32 %v331, %v742
      %v1049 = vadd.f32 %v332, %v747
      %v1050 = vadd.f32 %v333, %v752
      %v1051 = vadd.f32 %v334, %v757
      %v1052 = vadd.f32 %v335, %v762
      %v1053 = vadd.f32 %v336, %v767
      %v1054 = vadd.f32 %v337, %v772
      %v1055 = vadd.f32 %v338, %v777
      %v1056 = vadd.f32 %v339, %v782
      %v1057 = vadd.f32 %v340, %v787
      %v1058 = vadd.f32 %v341, %v792
      %v1059 = vadd.f32 %v342, %v797
      %v1060 = vadd.f32 %v343, %v802
      %v1061 = vadd.f32 %v344, %v807
      %v1062 = vadd.f32 %v345, %v812
      %v1063 = vadd.f32 %v346, %v817
      %v1064 = vadd.f32 %v347, %v822
      %v1065 = vadd.f32 %v348, %v827
      %v1066 = vadd.f32 %v349, %v832
      %v1067 = vadd.f32 %v350, %v837
      %v1068 = vadd.f32 %v351, %v842
      %v1069 = vadd.f32 %v352, %v847
      %v1070 = vadd.f32 %v353, %v852
      %v1071 = vadd.f32 %v354, %v857
      %v1072 = vadd.f32 %v355, %v862
      %v1073 = vadd.f32 %v356, %v867
      %v1074 = vadd.f32 %v357, %v872
      %v1075 = vadd.f32 %v358, %v877
      %v1076 = vadd.f32 %v359, %v882
      %v1077 = vadd.f32 %v360, %v887
      %v1078 = vadd.f32 %v361, %v892
      %v1079 = vadd.f32 %v362, %v897
      %v1080 = vadd.f32 %v363, %v902
      %v1081 = vadd.f32 %v364, %v907
      %v1082 = vadd.f32 %v365, %v912
      %v1083 = vadd.f32 %v366, %v917
      %v1084 = vadd.f32 %v367, %v922
      %v1085 = vadd.f32 %v368, %v927
      %v1086 = vadd.f32 %v369, %v932
      %v1087 = vadd.f32 %v370, %v937
      %v1088 = vadd.f32 %v371, %v942
      %v1089 = vadd.f32 %v372, %v947
      %v1090 = vadd.f32 %v373, %v952
      %v1091 = vadd.f32 %v374, %v957
      %v1092 = vadd.f32 %v375, %v962
      %v1093 = vadd.f32 %v376, %v967
      %v1094 = vadd.f32 %v377, %v972
      %v1095 = vadd.f32 %v378, %v977
      %v1096 = vadd.f32 %v379, %v982
      %v1097 = vadd.f32 %v380, %v987
      %v1098 = vadd.f32 %v381, %v992
      %v1099 = vadd.f32 %v382, %v997
      %v1100 = vadd.f32 %v383, %v1002
      %v1101 = vadd.f32 %v384, %v1007
      %v1102 = vadd.f32 %v385, %v1012
      %v1103 = vadd.f32 %v386, %v1017
      %v1104 = vadd.f32 %v387, %v1022
      %v1105 = vadd.f32 %v388, %v1027
      %v1106 = vadd.f32 %v389, %v1032
      %v1107 = vadd.f32 %v390, %v1037
      %v1108 = vadd.f32 %v391, %v1042
      %vm1109 = vcmask 523264
      %1110 = vst.msk [vmem:[#allocation2] sm:$0xff] %vm1109, %v1045
      %1111 = vst.msk [vmem:[#allocation2 + $0x8] sm:$0xff] %vm1109, %v1046
      %1112 = vst.msk [vmem:[#allocation2 + $0x10] sm:$0xff] %vm1109, %v1047
      %1113 = vst.msk [vmem:[#allocation2 + $0x18] sm:$0xff] %vm1109, %v1048
      %1114 = vst.msk [vmem:[#allocation2 + $0x20] sm:$0xff] %vm1109, %v1049
      %1115 = vst.msk [vmem:[#allocation2 + $0x28] sm:$0xff] %vm1109, %v1050
      %1116 = vst.msk [vmem:[#allocation2 + $0x30] sm:$0xff] %vm1109, %v1051
      %1117 = vst.msk [vmem:[#allocation2 + $0x38] sm:$0xff] %vm1109, %v1052
      %1118 = vst.msk [vmem:[#allocation2 + $0x40] sm:$0xff] %vm1109, %v1053
      %1119 = vst.msk [vmem:[#allocation2 + $0x48] sm:$0xff] %vm1109, %v1054
      %1120 = vst.msk [vmem:[#allocation2 + $0x50] sm:$0xff] %vm1109, %v1055
      %1121 = vst.msk [vmem:[#allocation2 + $0x58] sm:$0xff] %vm1109, %v1056
      %1122 = vst.msk [vmem:[#allocation2 + $0x60] sm:$0xff] %vm1109, %v1057
      %1123 = vst.msk [vmem:[#allocation2 + $0x68] sm:$0xff] %vm1109, %v1058
      %1124 = vst.msk [vmem:[#allocation2 + $0x70] sm:$0xff] %vm1109, %v1059
      %1125 = vst.msk [vmem:[#allocation2 + $0x78] sm:$0xff] %vm1109, %v1060
      %1126 = vst.msk [vmem:[#allocation2 + $0x80] sm:$0xff] %vm1109, %v1061
      %1127 = vst.msk [vmem:[#allocation2 + $0x88] sm:$0xff] %vm1109, %v1062
      %1128 = vst.msk [vmem:[#allocation2 + $0x90] sm:$0xff] %vm1109, %v1063
      %1129 = vst.msk [vmem:[#allocation2 + $0x98] sm:$0xff] %vm1109, %v1064
      %1130 = vst.msk [vmem:[#allocation2 + $0xa0] sm:$0xff] %vm1109, %v1065
      %1131 = vst.msk [vmem:[#allocation2 + $0xa8] sm:$0xff] %vm1109, %v1066
      %1132 = vst.msk [vmem:[#allocation2 + $0xb0] sm:$0xff] %vm1109, %v1067
      %1133 = vst.msk [vmem:[#allocation2 + $0xb8] sm:$0xff] %vm1109, %v1068
      %1134 = vst.msk [vmem:[#allocation2 + $0xc0] sm:$0xff] %vm1109, %v1069
      %1135 = vst.msk [vmem:[#allocation2 + $0xc8] sm:$0xff] %vm1109, %v1070
      %1136 = vst.msk [vmem:[#allocation2 + $0xd0] sm:$0xff] %vm1109, %v1071
      %1137 = vst.msk [vmem:[#allocation2 + $0xd8] sm:$0xff] %vm1109, %v1072
      %1138 = vst.msk [vmem:[#allocation2 + $0xe0] sm:$0xff] %vm1109, %v1073
      %1139 = vst.msk [vmem:[#allocation2 + $0xe8] sm:$0xff] %vm1109, %v1074
      %1140 = vst.msk [vmem:[#allocation2 + $0xf0] sm:$0xff] %vm1109, %v1075
      %1141 = vst.msk [vmem:[#allocation2 + $0xf8] sm:$0xff] %vm1109, %v1076
      %1142 = vst.msk [vmem:[#allocation2 + $0x100] sm:$0xff] %vm1109, %v1077
      %1143 = vst.msk [vmem:[#allocation2 + $0x108] sm:$0xff] %vm1109, %v1078
      %1144 = vst.msk [vmem:[#allocation2 + $0x110] sm:$0xff] %vm1109, %v1079
      %1145 = vst.msk [vmem:[#allocation2 + $0x118] sm:$0xff] %vm1109, %v1080
      %1146 = vst.msk [vmem:[#allocation2 + $0x120] sm:$0xff] %vm1109, %v1081
      %1147 = vst.msk [vmem:[#allocation2 + $0x128] sm:$0xff] %vm1109, %v1082
      %1148 = vst.msk [vmem:[#allocation2 + $0x130] sm:$0xff] %vm1109, %v1083
      %1149 = vst.msk [vmem:[#allocation2 + $0x138] sm:$0xff] %vm1109, %v1084
      %1150 = vst.msk [vmem:[#allocation2 + $0x140] sm:$0xff] %vm1109, %v1085
      %1151 = vst.msk [vmem:[#allocation2 + $0x148] sm:$0xff] %vm1109, %v1086
      %1152 = vst.msk [vmem:[#allocation2 + $0x150] sm:$0xff] %vm1109, %v1087
      %1153 = vst.msk [vmem:[#allocation2 + $0x158] sm:$0xff] %vm1109, %v1088
      %1154 = vst.msk [vmem:[#allocation2 + $0x160] sm:$0xff] %vm1109, %v1089
      %1155 = vst.msk [vmem:[#allocation2 + $0x168] sm:$0xff] %vm1109, %v1090
      %1156 = vst.msk [vmem:[#allocation2 + $0x170] sm:$0xff] %vm1109, %v1091
      %1157 = vst.msk [vmem:[#allocation2 + $0x178] sm:$0xff] %vm1109, %v1092
      %1158 = vst.msk [vmem:[#allocation2 + $0x180] sm:$0xff] %vm1109, %v1093
      %1159 = vst.msk [vmem:[#allocation2 + $0x188] sm:$0xff] %vm1109, %v1094
      %1160 = vst.msk [vmem:[#allocation2 + $0x190] sm:$0xff] %vm1109, %v1095
      %1161 = vst.msk [vmem:[#allocation2 + $0x198] sm:$0xff] %vm1109, %v1096
      %1162 = vst.msk [vmem:[#allocation2 + $0x1a0] sm:$0xff] %vm1109, %v1097
      %1163 = vst.msk [vmem:[#allocation2 + $0x1a8] sm:$0xff] %vm1109, %v1098
      %1164 = vst.msk [vmem:[#allocation2 + $0x1b0] sm:$0xff] %vm1109, %v1099
      %1165 = vst.msk [vmem:[#allocation2 + $0x1b8] sm:$0xff] %vm1109, %v1100
      %1166 = vst.msk [vmem:[#allocation2 + $0x1c0] sm:$0xff] %vm1109, %v1101
      %1167 = vst.msk [vmem:[#allocation2 + $0x1c8] sm:$0xff] %vm1109, %v1102
      %1168 = vst.msk [vmem:[#allocation2 + $0x1d0] sm:$0xff] %vm1109, %v1103
      %1169 = vst.msk [vmem:[#allocation2 + $0x1d8] sm:$0xff] %vm1109, %v1104
      %1170 = vst.msk [vmem:[#allocation2 + $0x1e0] sm:$0xff] %vm1109, %v1105
      %1171 = vst.msk [vmem:[#allocation2 + $0x1e8] sm:$0xff] %vm1109, %v1106
      %1172 = vst.msk [vmem:[#allocation2 + $0x1f0] sm:$0xff] %vm1109, %v1107
      %1173 = vst.msk [vmem:[#allocation2 + $0x1f8] sm:$0xff] %vm1109, %v1108
      // Predicated region
      $region37: #{tpu_custom_call.1} parent=31 // pred_check
        %p1174 = pneg %p259
      $region38: #{tpu_custom_call.1} parent=31 // pred_check_branch
        %1176 = sbr.rel (%p1174) target = $region40
      $region39: #{tpu_custom_call.1} parent=31 // pred_region
        %v1177 = vld [vmem:[#allocation2] sm:$0xff]
        %v1178 = vld [vmem:[#allocation2 + $0x8] sm:$0xff]
        %v1179 = vld [vmem:[#allocation2 + $0x10] sm:$0xff]
        %v1180 = vld [vmem:[#allocation2 + $0x18] sm:$0xff]
        %v1181 = vld [vmem:[#allocation2 + $0x20] sm:$0xff]
        %v1182 = vld [vmem:[#allocation2 + $0x28] sm:$0xff]
        %v1183 = vld [vmem:[#allocation2 + $0x30] sm:$0xff]
        %v1184 = vld [vmem:[#allocation2 + $0x38] sm:$0xff]
        %v1185 = vld [vmem:[#allocation2 + $0x40] sm:$0xff]
        %v1186 = vld [vmem:[#allocation2 + $0x48] sm:$0xff]
        %v1187 = vld [vmem:[#allocation2 + $0x50] sm:$0xff]
        %v1188 = vld [vmem:[#allocation2 + $0x58] sm:$0xff]
        %v1189 = vld [vmem:[#allocation2 + $0x60] sm:$0xff]
        %v1190 = vld [vmem:[#allocation2 + $0x68] sm:$0xff]
        %v1191 = vld [vmem:[#allocation2 + $0x70] sm:$0xff]
        %v1192 = vld [vmem:[#allocation2 + $0x78] sm:$0xff]
        %v1193 = vld [vmem:[#allocation2 + $0x80] sm:$0xff]
        %v1194 = vld [vmem:[#allocation2 + $0x88] sm:$0xff]
        %v1195 = vld [vmem:[#allocation2 + $0x90] sm:$0xff]
        %v1196 = vld [vmem:[#allocation2 + $0x98] sm:$0xff]
        %v1197 = vld [vmem:[#allocation2 + $0xa0] sm:$0xff]
        %v1198 = vld [vmem:[#allocation2 + $0xa8] sm:$0xff]
        %v1199 = vld [vmem:[#allocation2 + $0xb0] sm:$0xff]
        %v1200 = vld [vmem:[#allocation2 + $0xb8] sm:$0xff]
        %v1201 = vld [vmem:[#allocation2 + $0xc0] sm:$0xff]
        %v1202 = vld [vmem:[#allocation2 + $0xc8] sm:$0xff]
        %v1203 = vld [vmem:[#allocation2 + $0xd0] sm:$0xff]
        %v1204 = vld [vmem:[#allocation2 + $0xd8] sm:$0xff]
        %v1205 = vld [vmem:[#allocation2 + $0xe0] sm:$0xff]
        %v1206 = vld [vmem:[#allocation2 + $0xe8] sm:$0xff]
        %v1207 = vld [vmem:[#allocation2 + $0xf0] sm:$0xff]
        %v1208 = vld [vmem:[#allocation2 + $0xf8] sm:$0xff]
        %v1209 = vld [vmem:[#allocation2 + $0x100] sm:$0xff]
        %v1210 = vld [vmem:[#allocation2 + $0x108] sm:$0xff]
        %v1211 = vld [vmem:[#allocation2 + $0x110] sm:$0xff]
        %v1212 = vld [vmem:[#allocation2 + $0x118] sm:$0xff]
        %v1213 = vld [vmem:[#allocation2 + $0x120] sm:$0xff]
        %v1214 = vld [vmem:[#allocation2 + $0x128] sm:$0xff]
        %v1215 = vld [vmem:[#allocation2 + $0x130] sm:$0xff]
        %v1216 = vld [vmem:[#allocation2 + $0x138] sm:$0xff]
        %v1217 = vld [vmem:[#allocation2 + $0x140] sm:$0xff]
        %v1218 = vld [vmem:[#allocation2 + $0x148] sm:$0xff]
        %v1219 = vld [vmem:[#allocation2 + $0x150] sm:$0xff]
        %v1220 = vld [vmem:[#allocation2 + $0x158] sm:$0xff]
        %v1221 = vld [vmem:[#allocation2 + $0x160] sm:$0xff]
        %v1222 = vld [vmem:[#allocation2 + $0x168] sm:$0xff]
        %v1223 = vld [vmem:[#allocation2 + $0x170] sm:$0xff]
        %v1224 = vld [vmem:[#allocation2 + $0x178] sm:$0xff]
        %v1225 = vld [vmem:[#allocation2 + $0x180] sm:$0xff]
        %v1226 = vld [vmem:[#allocation2 + $0x188] sm:$0xff]
        %v1227 = vld [vmem:[#allocation2 + $0x190] sm:$0xff]
        %v1228 = vld [vmem:[#allocation2 + $0x198] sm:$0xff]
        %v1229 = vld [vmem:[#allocation2 + $0x1a0] sm:$0xff]
        %v1230 = vld [vmem:[#allocation2 + $0x1a8] sm:$0xff]
        %v1231 = vld [vmem:[#allocation2 + $0x1b0] sm:$0xff]
        %v1232 = vld [vmem:[#allocation2 + $0x1b8] sm:$0xff]
        %v1233 = vld [vmem:[#allocation2 + $0x1c0] sm:$0xff]
        %v1234 = vld [vmem:[#allocation2 + $0x1c8] sm:$0xff]
        %v1235 = vld [vmem:[#allocation2 + $0x1d0] sm:$0xff]
        %v1236 = vld [vmem:[#allocation2 + $0x1d8] sm:$0xff]
        %v1237 = vld [vmem:[#allocation2 + $0x1e0] sm:$0xff]
        %v1238 = vld [vmem:[#allocation2 + $0x1e8] sm:$0xff]
        %v1239 = vld [vmem:[#allocation2 + $0x1f0] sm:$0xff]
        %v1240 = vld [vmem:[#allocation2 + $0x1f8] sm:$0xff]
        %v1241 = vld [vmem:[%s249] sm:$0x1]
        %v1243 = vlaneseq
        %v1244 = vshrl.u32 %v1243, 7
        %v1245 = vsub.s32 0, %v1244
        %v1246 = vrot.slane %v1241, %v1245
        %v1248 = vadd.f32 %v1177, %v1246
        %v1249 = vadd.f32 %v1178, %v1246
        %v1250 = vadd.f32 %v1179, %v1246
        %v1251 = vadd.f32 %v1180, %v1246
        %v1252 = vadd.f32 %v1181, %v1246
        %v1253 = vadd.f32 %v1182, %v1246
        %v1254 = vadd.f32 %v1183, %v1246
        %v1255 = vadd.f32 %v1184, %v1246
        %v1256 = vadd.f32 %v1185, %v1246
        %v1257 = vadd.f32 %v1186, %v1246
        %v1258 = vadd.f32 %v1187, %v1246
        %v1259 = vadd.f32 %v1188, %v1246
        %v1260 = vadd.f32 %v1189, %v1246
        %v1261 = vadd.f32 %v1190, %v1246
        %v1262 = vadd.f32 %v1191, %v1246
        %v1263 = vadd.f32 %v1192, %v1246
        %v1264 = vadd.f32 %v1193, %v1246
        %v1265 = vadd.f32 %v1194, %v1246
        %v1266 = vadd.f32 %v1195, %v1246
        %v1267 = vadd.f32 %v1196, %v1246
        %v1268 = vadd.f32 %v1197, %v1246
        %v1269 = vadd.f32 %v1198, %v1246
        %v1270 = vadd.f32 %v1199, %v1246
        %v1271 = vadd.f32 %v1200, %v1246
        %v1272 = vadd.f32 %v1201, %v1246
        %v1273 = vadd.f32 %v1202, %v1246
        %v1274 = vadd.f32 %v1203, %v1246
        %v1275 = vadd.f32 %v1204, %v1246
        %v1276 = vadd.f32 %v1205, %v1246
        %v1277 = vadd.f32 %v1206, %v1246
        %v1278 = vadd.f32 %v1207, %v1246
        %v1279 = vadd.f32 %v1208, %v1246
        %v1280 = vadd.f32 %v1209, %v1246
        %v1281 = vadd.f32 %v1210, %v1246
        %v1282 = vadd.f32 %v1211, %v1246
        %v1283 = vadd.f32 %v1212, %v1246
        %v1284 = vadd.f32 %v1213, %v1246
        %v1285 = vadd.f32 %v1214, %v1246
        %v1286 = vadd.f32 %v1215, %v1246
        %v1287 = vadd.f32 %v1216, %v1246
        %v1288 = vadd.f32 %v1217, %v1246
        %v1289 = vadd.f32 %v1218, %v1246
        %v1290 = vadd.f32 %v1219, %v1246
        %v1291 = vadd.f32 %v1220, %v1246
        %v1292 = vadd.f32 %v1221, %v1246
        %v1293 = vadd.f32 %v1222, %v1246
        %v1294 = vadd.f32 %v1223, %v1246
        %v1295 = vadd.f32 %v1224, %v1246
        %v1296 = vadd.f32 %v1225, %v1246
        %v1297 = vadd.f32 %v1226, %v1246
        %v1298 = vadd.f32 %v1227, %v1246
        %v1299 = vadd.f32 %v1228, %v1246
        %v1300 = vadd.f32 %v1229, %v1246
        %v1301 = vadd.f32 %v1230, %v1246
        %v1302 = vadd.f32 %v1231, %v1246
        %v1303 = vadd.f32 %v1232, %v1246
        %v1304 = vadd.f32 %v1233, %v1246
        %v1305 = vadd.f32 %v1234, %v1246
        %v1306 = vadd.f32 %v1235, %v1246
        %v1307 = vadd.f32 %v1236, %v1246
        %v1308 = vadd.f32 %v1237, %v1246
        %v1309 = vadd.f32 %v1238, %v1246
        %v1310 = vadd.f32 %v1239, %v1246
        %v1311 = vadd.f32 %v1240, %v1246
        %v1312 = vmax.f32 %v1248, 0.0
        %v1313 = vmax.f32 %v1249, 0.0
        %v1314 = vmax.f32 %v1250, 0.0
        %v1315 = vmax.f32 %v1251, 0.0
        %v1316 = vmax.f32 %v1252, 0.0
        %v1317 = vmax.f32 %v1253, 0.0
        %v1318 = vmax.f32 %v1254, 0.0
        %v1319 = vmax.f32 %v1255, 0.0
        %v1320 = vmax.f32 %v1256, 0.0
        %v1321 = vmax.f32 %v1257, 0.0
        %v1322 = vmax.f32 %v1258, 0.0
        %v1323 = vmax.f32 %v1259, 0.0
        %v1324 = vmax.f32 %v1260, 0.0
        %v1325 = vmax.f32 %v1261, 0.0
        %v1326 = vmax.f32 %v1262, 0.0
        %v1327 = vmax.f32 %v1263, 0.0
        %v1328 = vmax.f32 %v1264, 0.0
        %v1329 = vmax.f32 %v1265, 0.0
        %v1330 = vmax.f32 %v1266, 0.0
        %v1331 = vmax.f32 %v1267, 0.0
        %v1332 = vmax.f32 %v1268, 0.0
        %v1333 = vmax.f32 %v1269, 0.0
        %v1334 = vmax.f32 %v1270, 0.0
        %v1335 = vmax.f32 %v1271, 0.0
        %v1336 = vmax.f32 %v1272, 0.0
        %v1337 = vmax.f32 %v1273, 0.0
        %v1338 = vmax.f32 %v1274, 0.0
        %v1339 = vmax.f32 %v1275, 0.0
        %v1340 = vmax.f32 %v1276, 0.0
        %v1341 = vmax.f32 %v1277, 0.0
        %v1342 = vmax.f32 %v1278, 0.0
        %v1343 = vmax.f32 %v1279, 0.0
        %v1344 = vmax.f32 %v1280, 0.0
        %v1345 = vmax.f32 %v1281, 0.0
        %v1346 = vmax.f32 %v1282, 0.0
        %v1347 = vmax.f32 %v1283, 0.0
        %v1348 = vmax.f32 %v1284, 0.0
        %v1349 = vmax.f32 %v1285, 0.0
        %v1350 = vmax.f32 %v1286, 0.0
        %v1351 = vmax.f32 %v1287, 0.0
        %v1352 = vmax.f32 %v1288, 0.0
        %v1353 = vmax.f32 %v1289, 0.0
        %v1354 = vmax.f32 %v1290, 0.0
        %v1355 = vmax.f32 %v1291, 0.0
        %v1356 = vmax.f32 %v1292, 0.0
        %v1357 = vmax.f32 %v1293, 0.0
        %v1358 = vmax.f32 %v1294, 0.0
        %v1359 = vmax.f32 %v1295, 0.0
        %v1360 = vmax.f32 %v1296, 0.0
        %v1361 = vmax.f32 %v1297, 0.0
        %v1362 = vmax.f32 %v1298, 0.0
        %v1363 = vmax.f32 %v1299, 0.0
        %v1364 = vmax.f32 %v1300, 0.0
        %v1365 = vmax.f32 %v1301, 0.0
        %v1366 = vmax.f32 %v1302, 0.0
        %v1367 = vmax.f32 %v1303, 0.0
        %v1368 = vmax.f32 %v1304, 0.0
        %v1369 = vmax.f32 %v1305, 0.0
        %v1370 = vmax.f32 %v1306, 0.0
        %v1371 = vmax.f32 %v1307, 0.0
        %v1372 = vmax.f32 %v1308, 0.0
        %v1373 = vmax.f32 %v1309, 0.0
        %v1374 = vmax.f32 %v1310, 0.0
        %v1375 = vmax.f32 %v1311, 0.0
        %1376 = vst.msk [vmem:[%s257] sm:$0xff] %vm1109, %v1312
        %1377 = vst.msk [vmem:[%s257 + $0x8] sm:$0xff] %vm1109, %v1313
        %1378 = vst.msk [vmem:[%s257 + $0x10] sm:$0xff] %vm1109, %v1314
        %1379 = vst.msk [vmem:[%s257 + $0x18] sm:$0xff] %vm1109, %v1315
        %1380 = vst.msk [vmem:[%s257 + $0x20] sm:$0xff] %vm1109, %v1316
        %1381 = vst.msk [vmem:[%s257 + $0x28] sm:$0xff] %vm1109, %v1317
        %1382 = vst.msk [vmem:[%s257 + $0x30] sm:$0xff] %vm1109, %v1318
        %1383 = vst.msk [vmem:[%s257 + $0x38] sm:$0xff] %vm1109, %v1319
        %1384 = vst.msk [vmem:[%s257 + $0x40] sm:$0xff] %vm1109, %v1320
        %1385 = vst.msk [vmem:[%s257 + $0x48] sm:$0xff] %vm1109, %v1321
        %1386 = vst.msk [vmem:[%s257 + $0x50] sm:$0xff] %vm1109, %v1322
        %1387 = vst.msk [vmem:[%s257 + $0x58] sm:$0xff] %vm1109, %v1323
        %1388 = vst.msk [vmem:[%s257 + $0x60] sm:$0xff] %vm1109, %v1324
        %1389 = vst.msk [vmem:[%s257 + $0x68] sm:$0xff] %vm1109, %v1325
        %1390 = vst.msk [vmem:[%s257 + $0x70] sm:$0xff] %vm1109, %v1326
        %1391 = vst.msk [vmem:[%s257 + $0x78] sm:$0xff] %vm1109, %v1327
        %1392 = vst.msk [vmem:[%s257 + $0x80] sm:$0xff] %vm1109, %v1328
        %1393 = vst.msk [vmem:[%s257 + $0x88] sm:$0xff] %vm1109, %v1329
        %1394 = vst.msk [vmem:[%s257 + $0x90] sm:$0xff] %vm1109, %v1330
        %1395 = vst.msk [vmem:[%s257 + $0x98] sm:$0xff] %vm1109, %v1331
        %1396 = vst.msk [vmem:[%s257 + $0xa0] sm:$0xff] %vm1109, %v1332
        %1397 = vst.msk [vmem:[%s257 + $0xa8] sm:$0xff] %vm1109, %v1333
        %1398 = vst.msk [vmem:[%s257 + $0xb0] sm:$0xff] %vm1109, %v1334
        %1399 = vst.msk [vmem:[%s257 + $0xb8] sm:$0xff] %vm1109, %v1335
        %1400 = vst.msk [vmem:[%s257 + $0xc0] sm:$0xff] %vm1109, %v1336
        %1401 = vst.msk [vmem:[%s257 + $0xc8] sm:$0xff] %vm1109, %v1337
        %1402 = vst.msk [vmem:[%s257 + $0xd0] sm:$0xff] %vm1109, %v1338
        %1403 = vst.msk [vmem:[%s257 + $0xd8] sm:$0xff] %vm1109, %v1339
        %1404 = vst.msk [vmem:[%s257 + $0xe0] sm:$0xff] %vm1109, %v1340
        %1405 = vst.msk [vmem:[%s257 + $0xe8] sm:$0xff] %vm1109, %v1341
        %1406 = vst.msk [vmem:[%s257 + $0xf0] sm:$0xff] %vm1109, %v1342
        %1407 = vst.msk [vmem:[%s257 + $0xf8] sm:$0xff] %vm1109, %v1343
        %1408 = vst.msk [vmem:[%s257 + $0x100] sm:$0xff] %vm1109, %v1344
        %1409 = vst.msk [vmem:[%s257 + $0x108] sm:$0xff] %vm1109, %v1345
        %1410 = vst.msk [vmem:[%s257 + $0x110] sm:$0xff] %vm1109, %v1346
        %1411 = vst.msk [vmem:[%s257 + $0x118] sm:$0xff] %vm1109, %v1347
        %1412 = vst.msk [vmem:[%s257 + $0x120] sm:$0xff] %vm1109, %v1348
        %1413 = vst.msk [vmem:[%s257 + $0x128] sm:$0xff] %vm1109, %v1349
        %1414 = vst.msk [vmem:[%s257 + $0x130] sm:$0xff] %vm1109, %v1350
        %1415 = vst.msk [vmem:[%s257 + $0x138] sm:$0xff] %vm1109, %v1351
        %1416 = vst.msk [vmem:[%s257 + $0x140] sm:$0xff] %vm1109, %v1352
        %1417 = vst.msk [vmem:[%s257 + $0x148] sm:$0xff] %vm1109, %v1353
        %1418 = vst.msk [vmem:[%s257 + $0x150] sm:$0xff] %vm1109, %v1354
        %1419 = vst.msk [vmem:[%s257 + $0x158] sm:$0xff] %vm1109, %v1355
        %1420 = vst.msk [vmem:[%s257 + $0x160] sm:$0xff] %vm1109, %v1356
        %1421 = vst.msk [vmem:[%s257 + $0x168] sm:$0xff] %vm1109, %v1357
        %1422 = vst.msk [vmem:[%s257 + $0x170] sm:$0xff] %vm1109, %v1358
        %1423 = vst.msk [vmem:[%s257 + $0x178] sm:$0xff] %vm1109, %v1359
        %1424 = vst.msk [vmem:[%s257 + $0x180] sm:$0xff] %vm1109, %v1360
        %1425 = vst.msk [vmem:[%s257 + $0x188] sm:$0xff] %vm1109, %v1361
        %1426 = vst.msk [vmem:[%s257 + $0x190] sm:$0xff] %vm1109, %v1362
        %1427 = vst.msk [vmem:[%s257 + $0x198] sm:$0xff] %vm1109, %v1363
        %1428 = vst.msk [vmem:[%s257 + $0x1a0] sm:$0xff] %vm1109, %v1364
        %1429 = vst.msk [vmem:[%s257 + $0x1a8] sm:$0xff] %vm1109, %v1365
        %1430 = vst.msk [vmem:[%s257 + $0x1b0] sm:$0xff] %vm1109, %v1366
        %1431 = vst.msk [vmem:[%s257 + $0x1b8] sm:$0xff] %vm1109, %v1367
        %1432 = vst.msk [vmem:[%s257 + $0x1c0] sm:$0xff] %vm1109, %v1368
        %1433 = vst.msk [vmem:[%s257 + $0x1c8] sm:$0xff] %vm1109, %v1369
        %1434 = vst.msk [vmem:[%s257 + $0x1d0] sm:$0xff] %vm1109, %v1370
        %1435 = vst.msk [vmem:[%s257 + $0x1d8] sm:$0xff] %vm1109, %v1371
        %1436 = vst.msk [vmem:[%s257 + $0x1e0] sm:$0xff] %vm1109, %v1372
        %1437 = vst.msk [vmem:[%s257 + $0x1e8] sm:$0xff] %vm1109, %v1373
        %1438 = vst.msk [vmem:[%s257 + $0x1f0] sm:$0xff] %vm1109, %v1374
        %1439 = vst.msk [vmem:[%s257 + $0x1f8] sm:$0xff] %vm1109, %v1375
      $region40: #{tpu_custom_call.1} parent=31 // pred_fallthru
        _
      %s1440 = smul.u32 64, %s19
      %p1441 = scmp.lt.s32.totalorder %s1440, 255
      %s1442 = scalar_select %p1441, %s1440, 255
      %p1443 = scmp.lt.s32.totalorder %s20, 0
      %s1444 = scalar_select %p1443, %s20, 0
      %s1445 = sadd.s32 %s1444, %s1442
      %s1446 = smul.addr %s1445, 8
      %s1447 = scalar_lea.vmem %s3, %s1446
      // Predicated region
      $region41: #{tpu_custom_call.1} parent=31 // pred_check
        %p1448 = pneg %p135
      $region42: #{tpu_custom_call.1} parent=31 // pred_check_branch
        %1450 = sbr.rel (%p1448) target = $region44
      $region43: #{tpu_custom_call.1} parent=31 // pred_region
        %s1451 = smul.u32 64, %s19
      $region44: #{tpu_custom_call.1} parent=31 // pred_fallthru
        _
    $region32: #{tpu_custom_call.1} parent=5 // pred_fallthru
      _
    %p1452 = scmp.le.s32.totalorder 2, %s9
    // Predicated region
    $region45: #{tpu_custom_call.1} parent=5 // pred_check
      %p1453 = pneg %p1452
    $region46: #{tpu_custom_call.1} parent=5 // pred_check_branch
      %1455 = sbr.rel (%p1453) target = $region48
    $region47: #{tpu_custom_call.1} parent=5 // pred_region
      %s1456 = ssub.s32 %s9, 2
      // Predicated region
      $region49: #{tpu_custom_call.1} parent=47 // pred_check
        %p1457 = pneg %p141
      $region50: #{tpu_custom_call.1} parent=47 // pred_check_branch
        %1459 = sbr.rel (%p1457) target = $region52
      $region51: #{tpu_custom_call.1} parent=47 // pred_region
        %s1460 = smul.u32 64, %s22
        %p1461 = scmp.lt.s32.totalorder %s1460, 255
        %s1462 = scalar_select %p1461, %s1460, 255
        %p1463 = scmp.lt.s32.totalorder %s23, 0
        %s1464 = scalar_select %p1463, %s23, 0
        %s1465 = sadd.s32 %s1464, %s1462
        %s1466 = smul.addr %s1465, 8
        %s1467 = scalar_lea.vmem %s3, %s1466
      $region52: #{tpu_custom_call.1} parent=47 // pred_fallthru
        _
    $region48: #{tpu_custom_call.1} parent=5 // pred_fallthru
      _
  $region6: #{tpu_custom_call.1} parent=0 // loop_footer
    %s13 = sadd.s32 1, %s9
  $region7: #{tpu_custom_call.1} parent=0 // loop_footer_branch
    %8 = sbr.rel target = $region3
  $region8: #{tpu_custom_call.1} parent=0 // loop_exit
    _

</llo_original>
